<compile_context>
chip_gen: v7x
topology: tpu7x:2x2x1
jax: 0.10.0
libtpu: 0.0.40
codegen_flags: <defaults>
</compile_context>

<pallas_src>
import jax
import jax.numpy as jnp
import numpy as np
from jax.experimental import pallas as pl
from jax.experimental.pallas import tpu as pltpu

# Small but constructor-consistent hyper-parameters of SCHetNet
H_CH   = 32   # h_channels
LAYERS = 4    # num_layers
S_CH   = 4    # s_channels
R_CH   = 3    # r_channels
NUM_S  = 8    # num_s
NUM_R  = 16   # num_r
NUM_O  = 7    # num_o
BATCH  = 2
NODES  = BATCH * (NUM_S + NUM_R)
EPS    = 1e-5
SLOPE  = 0.2  # LeakyReLU negative slope

# ---- f32 parameter pack layout: (P32_ROWS, 64) f32, 8-row aligned sections --
R32_BN   = 0                      # 4 rows: gamma_s, beta_s, gamma_r, beta_r
R32_BG   = 8                      # (LAYERS, H_CH) GCN biases
R32_WREP = 16                     # (NODES, NUM_O), 1/H_CH folded in
R32_BLR  = 64                     # (1, NUM_O)
R32_SEL  = 72                     # (BATCH, NODES) batch-selection matrix
R32_WO1  = 80                     # (5, H_CH)
R32_BO1  = 88                     # (1, H_CH)
R32_WO2  = 96                     # (H_CH, NUM_O)
R32_BO2  = 128                    # (1, NUM_O)
P32_ROWS = 136
P32_COLS = 64

# ---- bf16 parameter pack layout: (PB16_ROWS, 32) bf16, 16-row aligned -------
RB_WS     = 0                     # (S_CH, H_CH)
RB_WR     = 16                    # (R_CH, H_CH)
RB_WG     = 32                    # (LAYERS*H_CH, H_CH)
PB16_ROWS = RB_WG + LAYERS * H_CH # 160
PB16_COLS = H_CH                  # 32


def _lrelu(x):
    return jnp.where(x >= 0, x, SLOPE * x)


def _dot(a, b):
    # bf16 MXU operands, f32 accumulation (GCN path only).
    return jnp.dot(a.astype(jnp.bfloat16), b.astype(jnp.bfloat16),
                   preferred_element_type=jnp.float32)


def schetnet_kernel(s_x_ref, r_raw_ref, o_x_ref, a_ref, p32_ref, pb16_ref, y_ref):
    B, S, R, C, L, N = BATCH, NUM_S, NUM_R, H_CH, LAYERS, NODES

    # ---- BatchNorm1d (training mode, biased batch stats), two-pass variance --
    def batchnorm(x, row):
        cin = x.shape[1]
        gamma = p32_ref[row:row + 1, 0:cin]
        beta = p32_ref[row + 1:row + 2, 0:cin]
        n = float(x.shape[0])
        m = jnp.sum(x, axis=0, keepdims=True) / n
        d = x - m
        v = jnp.sum(d * d, axis=0, keepdims=True) / n
        return d * (gamma * jax.lax.rsqrt(v + EPS)) + beta

    s = batchnorm(s_x_ref[...], R32_BN)                     # (B*S, S_CH) f32
    r = batchnorm(r_raw_ref[:, 0:R_CH], R32_BN + 2)         # (B*R, R_CH) f32

    # ---- input projections (no bias, bf16 weights) + LeakyReLU ----
    hs = _lrelu(_dot(s, pb16_ref[RB_WS:RB_WS + S_CH, :]))   # (B*S, C)
    hr = _lrelu(_dot(r, pb16_ref[RB_WR:RB_WR + R_CH, :]))   # (B*R, C)

    # grouped node order (all s nodes, then all r nodes); A_hat was built in
    # grouped order by the wrapper, so x is a single in-register concat.
    x = jnp.concatenate([hs, hr], axis=0)                   # (N, C) f32

    # ---- GCN layers with residual: x = x + act(A_hat @ (x W_l) + b_l) ----
    a = a_ref[...]                                          # (N, N) bf16
    for l in range(L):
        wg = pb16_ref[RB_WG + C * l:RB_WG + C * (l + 1), :]
        bg = p32_ref[R32_BG + l:R32_BG + l + 1, 0:C]
        h = _dot(a, _dot(x, wg)) + bg
        x = x + _lrelu(h)

    # ---- readout: XLU channel-sum + f32 per-batch selection matmul ----
    pooled = jnp.sum(x, axis=-1, keepdims=True)             # (N, 1), XLU reduce
    w_rep = p32_ref[R32_WREP:R32_WREP + N, 0:NUM_O]         # 1/C folded in
    sel = p32_ref[R32_SEL:R32_SEL + B, 0:N]                 # (B, N) selector
    z = jnp.dot(sel, pooled * w_rep, preferred_element_type=jnp.float32)
    z = z + p32_ref[R32_BLR:R32_BLR + 1, 0:NUM_O]
    z = jnp.exp(z)
    z = z / (jnp.sum(z, axis=1, keepdims=True) + 1.0)

    # ---- o branch (f32): Linear(5,C) -> LeakyReLU -> Linear(C,num_o) -> exp --
    o = jnp.dot(o_x_ref[...], p32_ref[R32_WO1:R32_WO1 + 5, 0:C],
                preferred_element_type=jnp.float32)
    o = _lrelu(o + p32_ref[R32_BO1:R32_BO1 + 1, 0:C])
    o = jnp.dot(o, p32_ref[R32_WO2:R32_WO2 + C, 0:NUM_O],
                preferred_element_type=jnp.float32)
    o = o + p32_ref[R32_BO2:R32_BO2 + 1, 0:NUM_O]

    y_ref[...] = z * jnp.exp(o)                             # single (B, num_o) store


# ---- host-side helpers ------------------------------------------------------

def _grouped_perm():
    """perm[g] = original node index of grouped slot g (all s nodes, then all r)."""
    perm = np.zeros((NODES,), np.int32)
    for b in range(BATCH):
        for i in range(NUM_S):
            perm[b * NUM_S + i] = b * (NUM_S + NUM_R) + i
        for j in range(NUM_R):
            perm[BATCH * NUM_S + b * NUM_R + j] = b * (NUM_S + NUM_R) + NUM_S + j
    return perm


_PERM_NODES = _grouped_perm()


def pack_params(params):
    """One-time host-side packing: a small f32 pack (BN params, biases,
    readout / o-branch weights) and a bf16 pack (GCN-path matmul weights)."""
    b32 = np.zeros((P32_ROWS, P32_COLS), np.float32)
    b32[R32_BN + 0, :S_CH] = np.asarray(params["gamma_s"]).reshape(-1)
    b32[R32_BN + 1, :S_CH] = np.asarray(params["beta_s"]).reshape(-1)
    b32[R32_BN + 2, :R_CH] = np.asarray(params["gamma_r"]).reshape(-1)
    b32[R32_BN + 3, :R_CH] = np.asarray(params["beta_r"]).reshape(-1)
    b32[R32_BG:R32_BG + LAYERS, :H_CH] = np.asarray(params["b_gcn"])

    # Readout in grouped node order: W_rep[g] = w_linr[local(g)] / H_CH
    # (channel-mean 1/C folded in), Sel[b, g] = [node g belongs to batch b].
    w_linr = np.asarray(params["w_linr"])                   # (S+R, num_o)
    w_rep = np.zeros((NODES, NUM_O), np.float32)
    sel = np.zeros((BATCH, NODES), np.float32)
    for b in range(BATCH):
        for i in range(NUM_S):
            g = b * NUM_S + i
            w_rep[g] = w_linr[i]
            sel[b, g] = 1.0
        for j in range(NUM_R):
            g = BATCH * NUM_S + b * NUM_R + j
            w_rep[g] = w_linr[NUM_S + j]
            sel[b, g] = 1.0
    b32[R32_WREP:R32_WREP + NODES, :NUM_O] = w_rep / float(H_CH)
    b32[R32_BLR, :NUM_O] = np.asarray(params["b_linr"]).reshape(-1)
    b32[R32_SEL:R32_SEL + BATCH, :NODES] = sel
    b32[R32_WO1:R32_WO1 + 5, :H_CH] = np.asarray(params["w_o1"])
    b32[R32_BO1, :H_CH] = np.asarray(params["b_o1"]).reshape(-1)
    b32[R32_WO2:R32_WO2 + H_CH, :NUM_O] = np.asarray(params["w_o2"])
    b32[R32_BO2, :NUM_O] = np.asarray(params["b_o2"]).reshape(-1)

    b16 = np.zeros((PB16_ROWS, PB16_COLS), np.float32)
    b16[RB_WS:RB_WS + S_CH, :H_CH] = np.asarray(params["w_s"])
    b16[RB_WR:RB_WR + R_CH, :H_CH] = np.asarray(params["w_r"])
    b16[RB_WG:RB_WG + LAYERS * H_CH, :H_CH] = (
        np.asarray(params["w_gcn"]).reshape(LAYERS * H_CH, H_CH))
    return jnp.asarray(b32), jnp.asarray(b16, dtype=jnp.bfloat16)


def build_grouped_adjacency(edge_index):
    """Dense symmetric-normalized GCN adjacency (with self-loops), produced
    directly in grouped node order from one-hot comparisons + dense matmuls.
    No scatter-add, no gather: the grouped permutation is folded into the
    one-hot comparison columns."""
    perm = jnp.asarray(_PERM_NODES)                          # (N,)
    row = jnp.concatenate([edge_index[0].astype(jnp.int32), perm])   # + self loops
    col = jnp.concatenate([edge_index[1].astype(jnp.int32), perm])
    oh_row = (row[:, None] == perm[None, :]).astype(jnp.float32)     # (E+N, N)
    oh_col = (col[:, None] == perm[None, :]).astype(jnp.float32)     # (E+N, N)
    deg = jnp.sum(oh_col, axis=0)                            # grouped in-degree
    dis = jnp.where(deg > 0, jax.lax.rsqrt(deg), 0.0)
    norm = (oh_row @ dis) * (oh_col @ dis)                   # per-edge norm
    # A_hat[i, j] = sum_e norm_e [col_e == perm[i]] [row_e == perm[j]]
    return (oh_col * norm[:, None]).T @ oh_row               # (N, N)


@jax.jit
def schetnet_forward(s_x, r_x_raw, edge_index, packed_f32, packed_bf16):
    # TODO(synk): if edge_index is static across training steps, hoist the
    # A_hat build (and its bf16 cast) out of the per-step path entirely.
    a_hat = build_grouped_adjacency(edge_index).astype(jnp.bfloat16)
    # o-branch input pre-sliced here (cheap XLA slice) instead of in-kernel
    # per-row gathers at an unaligned lane offset.
    o_x = r_x_raw.reshape(BATCH, NUM_R, R_CH + 5)[:, 0, R_CH:]        # (B, 5)

    vmem = pl.BlockSpec(memory_space=pltpu.MemorySpace.VMEM)
    return pl.pallas_call(
        schetnet_kernel,
        out_shape=jax.ShapeDtypeStruct((BATCH, NUM_O), jnp.float32),
        in_specs=[vmem] * 6,
        out_specs=vmem,
    )(s_x, r_x_raw, o_x, a_hat, packed_f32, packed_bf16)


# ---- pure-JAX f32 reference (original interleaved ordering) -----------------

def _reference_adjacency(edge_index, num_nodes):
    row = edge_index[0]
    col = edge_index[1]
    loops = jnp.arange(num_nodes, dtype=edge_index.dtype)
    row = jnp.concatenate([row, loops])
    col = jnp.concatenate([col, loops])
    w = jnp.ones(row.shape[0], dtype=jnp.float32)
    deg = jnp.zeros((num_nodes,), jnp.float32).at[col].add(w)
    dis = jnp.where(deg > 0, jax.lax.rsqrt(deg), 0.0)
    norm = dis[row] * w * dis[col]
    return jnp.zeros((num_nodes, num_nodes), jnp.float32).at[col, row].add(norm)


def schetnet_reference(s_x, r_x_raw, edge_index, params):
    B, S, R, C = BATCH, NUM_S, NUM_R, H_CH
    r_in = r_x_raw.reshape(B, R, R_CH + 5)
    o_x = r_in[:, 0, R_CH:]
    r_x = r_in[:, :, :R_CH].reshape(B * R, R_CH)

    def bn(x, g, b):
        m = jnp.mean(x, axis=0, keepdims=True)
        v = jnp.mean((x - m) ** 2, axis=0, keepdims=True)
        return (x - m) / jnp.sqrt(v + EPS) * g + b

    s = bn(s_x, params["gamma_s"], params["beta_s"])
    r = bn(r_x, params["gamma_r"], params["beta_r"])
    hs = _lrelu(s @ params["w_s"]).reshape(B, S, C)
    hr = _lrelu(r @ params["w_r"]).reshape(B, R, C)
    x = jnp.concatenate([hs, hr], axis=1).reshape(B * (S + R), C)
    a = _reference_adjacency(edge_index, NODES)
    for l in range(LAYERS):
        h = a @ (x @ params["w_gcn"][l]) + params["b_gcn"][l][None, :]
        x = x + _lrelu(h)
    x = x.reshape(B, S + R, C).mean(axis=2)
    z = x @ params["w_linr"] + params["b_linr"]
    z = jnp.exp(z)
    z = z / (jnp.sum(z, axis=1, keepdims=True) + 1.0)
    o = _lrelu(o_x @ params["w_o1"] + params["b_o1"])
    o = o @ params["w_o2"] + params["b_o2"]
    o = jnp.exp(o)
    return z * o


def init_params(key):
    ks = jax.random.split(key, 10)

    def w(k, shape, fan_in):
        return (jax.random.normal(k, shape, jnp.float32) / jnp.sqrt(float(fan_in)))

    return dict(
        gamma_s=jnp.ones((1, S_CH), jnp.float32),
        beta_s=jnp.zeros((1, S_CH), jnp.float32),
        gamma_r=jnp.ones((1, R_CH), jnp.float32),
        beta_r=jnp.zeros((1, R_CH), jnp.float32),
        w_s=w(ks[0], (S_CH, H_CH), S_CH),
        w_r=w(ks[1], (R_CH, H_CH), R_CH),
        w_gcn=w(ks[2], (LAYERS, H_CH, H_CH), H_CH),
        b_gcn=0.01 * jax.random.normal(ks[3], (LAYERS, H_CH), jnp.float32),
        w_linr=w(ks[4], (NUM_S + NUM_R, NUM_O), NUM_S + NUM_R),
        b_linr=0.01 * jax.random.normal(ks[5], (1, NUM_O), jnp.float32),
        w_o1=w(ks[6], (5, H_CH), 5),
        b_o1=0.01 * jax.random.normal(ks[7], (1, H_CH), jnp.float32),
        w_o2=w(ks[8], (H_CH, NUM_O), H_CH),
        b_o2=0.01 * jax.random.normal(ks[9], (1, NUM_O), jnp.float32),
    )


if __name__ == "__main__":
    key = jax.random.PRNGKey(0)
    k1, k2, k3, kp = jax.random.split(key, 4)

    s_x = jax.random.normal(k1, (BATCH * NUM_S, S_CH), jnp.float32)
    r_x = jax.random.normal(k2, (BATCH * NUM_R, R_CH + 5), jnp.float32)
    num_edges = 96
    src = jax.random.randint(k3, (num_edges,), 0, NODES, dtype=jnp.int32)
    dst = jax.random.randint(jax.random.fold_in(k3, 1), (num_edges,), 0, NODES,
                             dtype=jnp.int32)
    edge_index = jnp.stack([src, dst], axis=0)

    params = init_params(kp)
    packed_f32, packed_bf16 = pack_params(params)   # one-time host-side packing

    y = schetnet_forward(s_x, r_x, edge_index, packed_f32, packed_bf16)
    y = jax.block_until_ready(y)

    y_ref = schetnet_reference(s_x, r_x, edge_index, params)
    assert y.shape == (BATCH, NUM_O)
    # bf16 MXU operands on the GCN path vs. the f32 reference (exp amplifies
    # rounding) -> modestly relaxed tolerance; BN, readout and o-branch are f32.
    assert jnp.allclose(y, y_ref, rtol=3e-2, atol=1e-3), (y, y_ref)
    print("KERNEL_OK")
</pallas_src>

<mosaic_0001>
module attributes {stable_mosaic.version = 11 : i64} {
  func.func @schetnet_kernel(%arg0: memref<16x4xf32, #tpu.memory_space<vmem>>, %arg1: memref<32x8xf32, #tpu.memory_space<vmem>>, %arg2: memref<2x5xf32, #tpu.memory_space<vmem>>, %arg3: memref<48x48xbf16, #tpu.memory_space<vmem>>, %arg4: memref<136x64xf32, #tpu.memory_space<vmem>>, %arg5: memref<160x32xbf16, #tpu.memory_space<vmem>>, %arg6: memref<2x7xf32, #tpu.memory_space<vmem>>) attributes {dimension_semantics = [], scalar_prefetch = 0 : i64, scratch_operands = 0 : i64, tpu.core_type = #tpu.core_type<tc>} {
    %c0 = arith.constant 0 : index
    %c0_0 = arith.constant 0 : index
    %0 = vector.load %arg0[%c0, %c0_0] : memref<16x4xf32, #tpu.memory_space<vmem>>, vector<16x4xf32>
    %c0_1 = arith.constant 0 : index
    %c0_2 = arith.constant 0 : index
    %1 = vector.load %arg4[%c0_1, %c0_2] : memref<136x64xf32, #tpu.memory_space<vmem>>, vector<1x4xf32>
    %c1 = arith.constant 1 : index
    %c0_3 = arith.constant 0 : index
    %2 = vector.load %arg4[%c1, %c0_3] : memref<136x64xf32, #tpu.memory_space<vmem>>, vector<1x4xf32>
    %cst = arith.constant dense<0.000000e+00> : vector<4xf32>
    %3 = vector.multi_reduction <add>, %0, %cst [0] : vector<16x4xf32> to vector<4xf32>
    %4 = vector.shape_cast %3 : vector<4xf32> to vector<1x4xf32>
    %cst_4 = arith.constant 1.600000e+01 : f32
    %5 = vector.broadcast %cst_4 : f32 to vector<1x4xf32>
    %6 = arith.divf %4, %5 : vector<1x4xf32>
    %7 = vector.broadcast %6 : vector<1x4xf32> to vector<16x4xf32>
    %8 = arith.subf %0, %7 : vector<16x4xf32>
    %9 = arith.mulf %8, %8 : vector<16x4xf32>
    %cst_5 = arith.constant dense<0.000000e+00> : vector<4xf32>
    %10 = vector.multi_reduction <add>, %9, %cst_5 [0] : vector<16x4xf32> to vector<4xf32>
    %11 = vector.shape_cast %10 : vector<4xf32> to vector<1x4xf32>
    %cst_6 = arith.constant 1.600000e+01 : f32
    %12 = vector.broadcast %cst_6 : f32 to vector<1x4xf32>
    %13 = arith.divf %11, %12 : vector<1x4xf32>
    %cst_7 = arith.constant 9.99999974E-6 : f32
    %14 = vector.broadcast %cst_7 : f32 to vector<1x4xf32>
    %15 = arith.addf %13, %14 : vector<1x4xf32>
    %16 = math.rsqrt %15 : vector<1x4xf32>
    %17 = arith.mulf %1, %16 : vector<1x4xf32>
    %18 = vector.broadcast %17 : vector<1x4xf32> to vector<16x4xf32>
    %19 = arith.mulf %8, %18 : vector<16x4xf32>
    %20 = vector.broadcast %2 : vector<1x4xf32> to vector<16x4xf32>
    %21 = arith.addf %19, %20 : vector<16x4xf32>
    %c0_8 = arith.constant 0 : index
    %c0_9 = arith.constant 0 : index
    %22 = vector.load %arg1[%c0_8, %c0_9] : memref<32x8xf32, #tpu.memory_space<vmem>>, vector<32x3xf32>
    %c2 = arith.constant 2 : index
    %c0_10 = arith.constant 0 : index
    %23 = vector.load %arg4[%c2, %c0_10] : memref<136x64xf32, #tpu.memory_space<vmem>>, vector<1x3xf32>
    %c3 = arith.constant 3 : index
    %c0_11 = arith.constant 0 : index
    %24 = vector.load %arg4[%c3, %c0_11] : memref<136x64xf32, #tpu.memory_space<vmem>>, vector<1x3xf32>
    %cst_12 = arith.constant dense<0.000000e+00> : vector<3xf32>
    %25 = vector.multi_reduction <add>, %22, %cst_12 [0] : vector<32x3xf32> to vector<3xf32>
    %26 = vector.shape_cast %25 : vector<3xf32> to vector<1x3xf32>
    %cst_13 = arith.constant 3.200000e+01 : f32
    %27 = vector.broadcast %cst_13 : f32 to vector<1x3xf32>
    %28 = arith.divf %26, %27 : vector<1x3xf32>
    %29 = vector.broadcast %28 : vector<1x3xf32> to vector<32x3xf32>
    %30 = arith.subf %22, %29 : vector<32x3xf32>
    %31 = arith.mulf %30, %30 : vector<32x3xf32>
    %cst_14 = arith.constant dense<0.000000e+00> : vector<3xf32>
    %32 = vector.multi_reduction <add>, %31, %cst_14 [0] : vector<32x3xf32> to vector<3xf32>
    %33 = vector.shape_cast %32 : vector<3xf32> to vector<1x3xf32>
    %cst_15 = arith.constant 3.200000e+01 : f32
    %34 = vector.broadcast %cst_15 : f32 to vector<1x3xf32>
    %35 = arith.divf %33, %34 : vector<1x3xf32>
    %cst_16 = arith.constant 9.99999974E-6 : f32
    %36 = vector.broadcast %cst_16 : f32 to vector<1x3xf32>
    %37 = arith.addf %35, %36 : vector<1x3xf32>
    %38 = math.rsqrt %37 : vector<1x3xf32>
    %39 = arith.mulf %23, %38 : vector<1x3xf32>
    %40 = vector.broadcast %39 : vector<1x3xf32> to vector<32x3xf32>
    %41 = arith.mulf %30, %40 : vector<32x3xf32>
    %42 = vector.broadcast %24 : vector<1x3xf32> to vector<32x3xf32>
    %43 = arith.addf %41, %42 : vector<32x3xf32>
    %c0_17 = arith.constant 0 : index
    %c0_18 = arith.constant 0 : index
    %44 = vector.load %arg5[%c0_17, %c0_18] : memref<160x32xbf16, #tpu.memory_space<vmem>>, vector<4x32xbf16>
    %45 = arith.truncf %21 : vector<16x4xf32> to vector<16x4xbf16>
    %cst_19 = arith.constant dense<0.000000e+00> : vector<16x32xf32>
    %46 = tpu.matmul %45, %44, %cst_19 {dimension_numbers = #tpu.dot_dimension_numbers<[1], [0], [0], [1], [0, 0, 1, 1], [], []>} : vector<16x4xbf16>, vector<4x32xbf16>, vector<16x32xf32> -> vector<16x32xf32>
    %cst_20 = arith.constant 0.000000e+00 : f32
    %47 = vector.broadcast %cst_20 : f32 to vector<16x32xf32>
    %48 = arith.cmpf oge, %46, %47 : vector<16x32xf32>
    %cst_21 = arith.constant 2.000000e-01 : f32
    %49 = vector.broadcast %cst_21 : f32 to vector<16x32xf32>
    %50 = arith.mulf %49, %46 : vector<16x32xf32>
    %51 = arith.select %48, %46, %50 : vector<16x32xi1>, vector<16x32xf32>
    %c16 = arith.constant 16 : index
    %c0_22 = arith.constant 0 : index
    %52 = vector.load %arg5[%c16, %c0_22] : memref<160x32xbf16, #tpu.memory_space<vmem>>, vector<3x32xbf16>
    %53 = arith.truncf %43 : vector<32x3xf32> to vector<32x3xbf16>
    %cst_23 = arith.constant dense<0.000000e+00> : vector<32x32xf32>
    %54 = tpu.matmul %53, %52, %cst_23 {dimension_numbers = #tpu.dot_dimension_numbers<[1], [0], [0], [1], [0, 0, 1, 1], [], []>} : vector<32x3xbf16>, vector<3x32xbf16>, vector<32x32xf32> -> vector<32x32xf32>
    %cst_24 = arith.constant 0.000000e+00 : f32
    %55 = vector.broadcast %cst_24 : f32 to vector<32x32xf32>
    %56 = arith.cmpf oge, %54, %55 : vector<32x32xf32>
    %cst_25 = arith.constant 2.000000e-01 : f32
    %57 = vector.broadcast %cst_25 : f32 to vector<32x32xf32>
    %58 = arith.mulf %57, %54 : vector<32x32xf32>
    %59 = arith.select %56, %54, %58 : vector<32x32xi1>, vector<32x32xf32>
    %60 = tpu.concatenate %51, %59 in 0 : vector<16x32xf32>, vector<32x32xf32> -> vector<48x32xf32>
    %c0_26 = arith.constant 0 : index
    %c0_27 = arith.constant 0 : index
    %61 = vector.load %arg3[%c0_26, %c0_27] : memref<48x48xbf16, #tpu.memory_space<vmem>>, vector<48x48xbf16>
    %c32 = arith.constant 32 : index
    %c0_28 = arith.constant 0 : index
    %62 = vector.load %arg5[%c32, %c0_28] : memref<160x32xbf16, #tpu.memory_space<vmem>>, vector<32x32xbf16>
    %c8 = arith.constant 8 : index
    %c0_29 = arith.constant 0 : index
    %63 = vector.load %arg4[%c8, %c0_29] : memref<136x64xf32, #tpu.memory_space<vmem>>, vector<1x32xf32>
    %64 = arith.truncf %60 : vector<48x32xf32> to vector<48x32xbf16>
    %cst_30 = arith.constant dense<0.000000e+00> : vector<48x32xf32>
    %65 = tpu.matmul %64, %62, %cst_30 {dimension_numbers = #tpu.dot_dimension_numbers<[1], [0], [0], [1], [0, 0, 1, 1], [], []>} : vector<48x32xbf16>, vector<32x32xbf16>, vector<48x32xf32> -> vector<48x32xf32>
    %66 = arith.truncf %65 : vector<48x32xf32> to vector<48x32xbf16>
    %cst_31 = arith.constant dense<0.000000e+00> : vector<48x32xf32>
    %67 = tpu.matmul %61, %66, %cst_31 {dimension_numbers = #tpu.dot_dimension_numbers<[1], [0], [0], [1], [0, 0, 1, 1], [], []>} : vector<48x48xbf16>, vector<48x32xbf16>, vector<48x32xf32> -> vector<48x32xf32>
    %68 = vector.broadcast %63 : vector<1x32xf32> to vector<48x32xf32>
    %69 = arith.addf %67, %68 : vector<48x32xf32>
    %cst_32 = arith.constant 0.000000e+00 : f32
    %70 = vector.broadcast %cst_32 : f32 to vector<48x32xf32>
    %71 = arith.cmpf oge, %69, %70 : vector<48x32xf32>
    %cst_33 = arith.constant 2.000000e-01 : f32
    %72 = vector.broadcast %cst_33 : f32 to vector<48x32xf32>
    %73 = arith.mulf %72, %69 : vector<48x32xf32>
    %74 = arith.select %71, %69, %73 : vector<48x32xi1>, vector<48x32xf32>
    %75 = arith.addf %60, %74 : vector<48x32xf32>
    %c64 = arith.constant 64 : index
    %c0_34 = arith.constant 0 : index
    %76 = vector.load %arg5[%c64, %c0_34] : memref<160x32xbf16, #tpu.memory_space<vmem>>, vector<32x32xbf16>
    %c9 = arith.constant 9 : index
    %c0_35 = arith.constant 0 : index
    %77 = vector.load %arg4[%c9, %c0_35] : memref<136x64xf32, #tpu.memory_space<vmem>>, vector<1x32xf32>
    %78 = arith.truncf %75 : vector<48x32xf32> to vector<48x32xbf16>
    %cst_36 = arith.constant dense<0.000000e+00> : vector<48x32xf32>
    %79 = tpu.matmul %78, %76, %cst_36 {dimension_numbers = #tpu.dot_dimension_numbers<[1], [0], [0], [1], [0, 0, 1, 1], [], []>} : vector<48x32xbf16>, vector<32x32xbf16>, vector<48x32xf32> -> vector<48x32xf32>
    %80 = arith.truncf %79 : vector<48x32xf32> to vector<48x32xbf16>
    %cst_37 = arith.constant dense<0.000000e+00> : vector<48x32xf32>
    %81 = tpu.matmul %61, %80, %cst_37 {dimension_numbers = #tpu.dot_dimension_numbers<[1], [0], [0], [1], [0, 0, 1, 1], [], []>} : vector<48x48xbf16>, vector<48x32xbf16>, vector<48x32xf32> -> vector<48x32xf32>
    %82 = vector.broadcast %77 : vector<1x32xf32> to vector<48x32xf32>
    %83 = arith.addf %81, %82 : vector<48x32xf32>
    %cst_38 = arith.constant 0.000000e+00 : f32
    %84 = vector.broadcast %cst_38 : f32 to vector<48x32xf32>
    %85 = arith.cmpf oge, %83, %84 : vector<48x32xf32>
    %cst_39 = arith.constant 2.000000e-01 : f32
    %86 = vector.broadcast %cst_39 : f32 to vector<48x32xf32>
    %87 = arith.mulf %86, %83 : vector<48x32xf32>
    %88 = arith.select %85, %83, %87 : vector<48x32xi1>, vector<48x32xf32>
    %89 = arith.addf %75, %88 : vector<48x32xf32>
    %c96 = arith.constant 96 : index
    %c0_40 = arith.constant 0 : index
    %90 = vector.load %arg5[%c96, %c0_40] : memref<160x32xbf16, #tpu.memory_space<vmem>>, vector<32x32xbf16>
    %c10 = arith.constant 10 : index
    %c0_41 = arith.constant 0 : index
    %91 = vector.load %arg4[%c10, %c0_41] : memref<136x64xf32, #tpu.memory_space<vmem>>, vector<1x32xf32>
    %92 = arith.truncf %89 : vector<48x32xf32> to vector<48x32xbf16>
    %cst_42 = arith.constant dense<0.000000e+00> : vector<48x32xf32>
    %93 = tpu.matmul %92, %90, %cst_42 {dimension_numbers = #tpu.dot_dimension_numbers<[1], [0], [0], [1], [0, 0, 1, 1], [], []>} : vector<48x32xbf16>, vector<32x32xbf16>, vector<48x32xf32> -> vector<48x32xf32>
    %94 = arith.truncf %93 : vector<48x32xf32> to vector<48x32xbf16>
    %cst_43 = arith.constant dense<0.000000e+00> : vector<48x32xf32>
    %95 = tpu.matmul %61, %94, %cst_43 {dimension_numbers = #tpu.dot_dimension_numbers<[1], [0], [0], [1], [0, 0, 1, 1], [], []>} : vector<48x48xbf16>, vector<48x32xbf16>, vector<48x32xf32> -> vector<48x32xf32>
    %96 = vector.broadcast %91 : vector<1x32xf32> to vector<48x32xf32>
    %97 = arith.addf %95, %96 : vector<48x32xf32>
    %cst_44 = arith.constant 0.000000e+00 : f32
    %98 = vector.broadcast %cst_44 : f32 to vector<48x32xf32>
    %99 = arith.cmpf oge, %97, %98 : vector<48x32xf32>
    %cst_45 = arith.constant 2.000000e-01 : f32
    %100 = vector.broadcast %cst_45 : f32 to vector<48x32xf32>
    %101 = arith.mulf %100, %97 : vector<48x32xf32>
    %102 = arith.select %99, %97, %101 : vector<48x32xi1>, vector<48x32xf32>
    %103 = arith.addf %89, %102 : vector<48x32xf32>
    %c128 = arith.constant 128 : index
    %c0_46 = arith.constant 0 : index
    %104 = vector.load %arg5[%c128, %c0_46] : memref<160x32xbf16, #tpu.memory_space<vmem>>, vector<32x32xbf16>
    %c11 = arith.constant 11 : index
    %c0_47 = arith.constant 0 : index
    %105 = vector.load %arg4[%c11, %c0_47] : memref<136x64xf32, #tpu.memory_space<vmem>>, vector<1x32xf32>
    %106 = arith.truncf %103 : vector<48x32xf32> to vector<48x32xbf16>
    %cst_48 = arith.constant dense<0.000000e+00> : vector<48x32xf32>
    %107 = tpu.matmul %106, %104, %cst_48 {dimension_numbers = #tpu.dot_dimension_numbers<[1], [0], [0], [1], [0, 0, 1, 1], [], []>} : vector<48x32xbf16>, vector<32x32xbf16>, vector<48x32xf32> -> vector<48x32xf32>
    %108 = arith.truncf %107 : vector<48x32xf32> to vector<48x32xbf16>
    %cst_49 = arith.constant dense<0.000000e+00> : vector<48x32xf32>
    %109 = tpu.matmul %61, %108, %cst_49 {dimension_numbers = #tpu.dot_dimension_numbers<[1], [0], [0], [1], [0, 0, 1, 1], [], []>} : vector<48x48xbf16>, vector<48x32xbf16>, vector<48x32xf32> -> vector<48x32xf32>
    %110 = vector.broadcast %105 : vector<1x32xf32> to vector<48x32xf32>
    %111 = arith.addf %109, %110 : vector<48x32xf32>
    %cst_50 = arith.constant 0.000000e+00 : f32
    %112 = vector.broadcast %cst_50 : f32 to vector<48x32xf32>
    %113 = arith.cmpf oge, %111, %112 : vector<48x32xf32>
    %cst_51 = arith.constant 2.000000e-01 : f32
    %114 = vector.broadcast %cst_51 : f32 to vector<48x32xf32>
    %115 = arith.mulf %114, %111 : vector<48x32xf32>
    %116 = arith.select %113, %111, %115 : vector<48x32xi1>, vector<48x32xf32>
    %117 = arith.addf %103, %116 : vector<48x32xf32>
    %cst_52 = arith.constant dense<0.000000e+00> : vector<48xf32>
    %118 = vector.multi_reduction <add>, %117, %cst_52 [1] : vector<48x32xf32> to vector<48xf32>
    %119 = vector.shape_cast %118 : vector<48xf32> to vector<48x1xf32>
    %c16_53 = arith.constant 16 : index
    %c0_54 = arith.constant 0 : index
    %120 = vector.load %arg4[%c16_53, %c0_54] : memref<136x64xf32, #tpu.memory_space<vmem>>, vector<48x7xf32>
    %c72 = arith.constant 72 : index
    %c0_55 = arith.constant 0 : index
    %121 = vector.load %arg4[%c72, %c0_55] : memref<136x64xf32, #tpu.memory_space<vmem>>, vector<2x48xf32>
    %122 = vector.broadcast %119 : vector<48x1xf32> to vector<48x7xf32>
    %123 = arith.mulf %122, %120 : vector<48x7xf32>
    %cst_56 = arith.constant dense<0.000000e+00> : vector<2x7xf32>
    %124 = tpu.matmul %121, %123, %cst_56 {dimension_numbers = #tpu.dot_dimension_numbers<[1], [0], [0], [1], [0, 0, 1, 1], [], []>} : vector<2x48xf32>, vector<48x7xf32>, vector<2x7xf32> -> vector<2x7xf32>
    %c64_57 = arith.constant 64 : index
    %c0_58 = arith.constant 0 : index
    %125 = vector.load %arg4[%c64_57, %c0_58] : memref<136x64xf32, #tpu.memory_space<vmem>>, vector<1x7xf32>
    %126 = vector.broadcast %125 : vector<1x7xf32> to vector<2x7xf32>
    %127 = arith.addf %124, %126 : vector<2x7xf32>
    %128 = math.exp %127 : vector<2x7xf32>
    %cst_59 = arith.constant dense<0.000000e+00> : vector<2xf32>
    %129 = vector.multi_reduction <add>, %128, %cst_59 [1] : vector<2x7xf32> to vector<2xf32>
    %130 = vector.shape_cast %129 : vector<2xf32> to vector<2x1xf32>
    %cst_60 = arith.constant 1.000000e+00 : f32
    %131 = vector.broadcast %cst_60 : f32 to vector<2x1xf32>
    %132 = arith.addf %130, %131 : vector<2x1xf32>
    %133 = vector.broadcast %132 : vector<2x1xf32> to vector<2x7xf32>
    %134 = arith.divf %128, %133 : vector<2x7xf32>
    %c0_61 = arith.constant 0 : index
    %c0_62 = arith.constant 0 : index
    %135 = vector.load %arg2[%c0_61, %c0_62] : memref<2x5xf32, #tpu.memory_space<vmem>>, vector<2x5xf32>
    %c80 = arith.constant 80 : index
    %c0_63 = arith.constant 0 : index
    %136 = vector.load %arg4[%c80, %c0_63] : memref<136x64xf32, #tpu.memory_space<vmem>>, vector<5x32xf32>
    %cst_64 = arith.constant dense<0.000000e+00> : vector<2x32xf32>
    %137 = tpu.matmul %135, %136, %cst_64 {dimension_numbers = #tpu.dot_dimension_numbers<[1], [0], [0], [1], [0, 0, 1, 1], [], []>} : vector<2x5xf32>, vector<5x32xf32>, vector<2x32xf32> -> vector<2x32xf32>
    %c88 = arith.constant 88 : index
    %c0_65 = arith.constant 0 : index
    %138 = vector.load %arg4[%c88, %c0_65] : memref<136x64xf32, #tpu.memory_space<vmem>>, vector<1x32xf32>
    %139 = vector.broadcast %138 : vector<1x32xf32> to vector<2x32xf32>
    %140 = arith.addf %137, %139 : vector<2x32xf32>
    %cst_66 = arith.constant 0.000000e+00 : f32
    %141 = vector.broadcast %cst_66 : f32 to vector<2x32xf32>
    %142 = arith.cmpf oge, %140, %141 : vector<2x32xf32>
    %cst_67 = arith.constant 2.000000e-01 : f32
    %143 = vector.broadcast %cst_67 : f32 to vector<2x32xf32>
    %144 = arith.mulf %143, %140 : vector<2x32xf32>
    %145 = arith.select %142, %140, %144 : vector<2x32xi1>, vector<2x32xf32>
    %c96_68 = arith.constant 96 : index
    %c0_69 = arith.constant 0 : index
    %146 = vector.load %arg4[%c96_68, %c0_69] : memref<136x64xf32, #tpu.memory_space<vmem>>, vector<32x7xf32>
    %cst_70 = arith.constant dense<0.000000e+00> : vector<2x7xf32>
    %147 = tpu.matmul %145, %146, %cst_70 {dimension_numbers = #tpu.dot_dimension_numbers<[1], [0], [0], [1], [0, 0, 1, 1], [], []>} : vector<2x32xf32>, vector<32x7xf32>, vector<2x7xf32> -> vector<2x7xf32>
    %c128_71 = arith.constant 128 : index
    %c0_72 = arith.constant 0 : index
    %148 = vector.load %arg4[%c128_71, %c0_72] : memref<136x64xf32, #tpu.memory_space<vmem>>, vector<1x7xf32>
    %149 = vector.broadcast %148 : vector<1x7xf32> to vector<2x7xf32>
    %150 = arith.addf %147, %149 : vector<2x7xf32>
    %151 = math.exp %150 : vector<2x7xf32>
    %152 = arith.mulf %134, %151 : vector<2x7xf32>
    %c0_73 = arith.constant 0 : index
    %c0_74 = arith.constant 0 : index
    %153 = vector.load %arg6[%c0_73, %c0_74] : memref<2x7xf32, #tpu.memory_space<vmem>>, vector<2x7xf32>
    tpu.vector_store %arg6[%c0_73, %c0_74], %152 {strides = array<i32>} : memref<2x7xf32, #tpu.memory_space<vmem>>, vector<2x7xf32>,
    return
  }
}

</mosaic_0001>

<llo_original>
// kernel: mul.3
$region0: #{mul.3}
  #allocation0 [shape = 's32[1]{0}', space=sflag, size = 0x4, scoped, tag = 'scoped memory for mul.3']
  %s0 = inlined_call_operand.vmem [shape: f32[144], index: 0, kind: input, shape index: {}]
  %s1 = inlined_call_operand.vmem [shape: f32[144], index: 1, kind: input, shape index: {}]
  %s2 = inlined_call_operand.vmem [shape: bf16[144], index: 2, kind: output, shape index: {}]
  %v3 = vld [vmem:[%s0] sm:$0x3]
  %v4 = vld [vmem:[%s1] sm:$0x3]
  %5 = xla_tuple %v3, %v4
  %6 = xla_tuple %5
  %v7 = vmul.f32 %v3, %v4
  %8 = xla_tuple %v7
  %v9 = vpack.c.bf16 0.0, %v7
  %10 = vst [vmem:[%s2] sm:$0x1] %v9

// kernel: schetnet_forward.1
$region0: #{schetnet_forward.1}
  #allocation0 [shape = 'u32[]', space=smem, size = 0x4, offset = 0x4, fixed_abs, tag = 'smem constant byte address 0x4 - core index']
  #allocation1 [shape = 'u32[144,128]{1,0:T(1,128)}', space=vmem, size = 0x12000, scoped, tag = 'internal scratch']
  %s0 = inlined_call_operand.vmem [shape: f32[16,4], index: 0, kind: input, shape index: {}]
  %s1 = inlined_call_operand.vmem [shape: f32[32,8], index: 1, kind: input, shape index: {}]
  %s2 = inlined_call_operand.vmem [shape: f32[2,5], index: 2, kind: input, shape index: {}]
  %s3 = inlined_call_operand.vmem [shape: bf16[48,48], index: 3, kind: input, shape index: {}]
  %s4 = inlined_call_operand.vmem [shape: f32[136,64], index: 4, kind: input, shape index: {}]
  %s5 = inlined_call_operand.vmem [shape: bf16[160,32], index: 5, kind: input, shape index: {}]
  %s6 = inlined_call_operand.hbm [shape: f32[2,7], index: 6, kind: output, shape index: {}]
  %s7 = sld [smem:[#allocation0]]
  $region34: #{schetnet_forward.1} parent=0
    _
  %s9 = ssub.s32 1, %s7
  %s10 = scalar_select 0, %s9, %s7
  $region1: #{schetnet_forward.1} parent=0
    #allocation2 [shape = 'u8[1024]{0}', space=vmem, size = 0x400, scoped, tag = 'output window, operand 0, single buffered']
    #allocation3 [shape = 's32[1]{0}', space=sflag, size = 0x4, scoped, tag = 'scoped memory for schetnet_forward.1']
    %11 = vsyncpa [#allocation3], 0
    // Predicated region
    $region2: #{schetnet_forward.1} parent=1 // pred_check
      _
    $region3: #{schetnet_forward.1} parent=1 // pred_check_branch
      %13 = sbr.rel (0) target = $region5
    $region4: #{schetnet_forward.1} parent=1 // pred_region
      _
    $region5: #{schetnet_forward.1} parent=1 // pred_fallthru
      _
    // Predicated region
    $region6: #{schetnet_forward.1} parent=1 // pred_check
      _
    $region7: #{schetnet_forward.1} parent=1 // pred_check_branch
      %15 = sbr.rel (0) target = $region9
    $region8: #{schetnet_forward.1} parent=1 // pred_region
      _
    $region9: #{schetnet_forward.1} parent=1 // pred_fallthru
      _
    // Predicated region
    $region10: #{schetnet_forward.1} parent=1 // pred_check
      _
    $region11: #{schetnet_forward.1} parent=1 // pred_check_branch
      %17 = sbr.rel (0) target = $region13
    $region12: #{schetnet_forward.1} parent=1 // pred_region
      _
    $region13: #{schetnet_forward.1} parent=1 // pred_fallthru
      _
    // Predicated region
    $region14: #{schetnet_forward.1} parent=1 // pred_check
      _
    $region15: #{schetnet_forward.1} parent=1 // pred_check_branch
      %19 = sbr.rel (0) target = $region17
    $region16: #{schetnet_forward.1} parent=1 // pred_region
      _
    $region17: #{schetnet_forward.1} parent=1 // pred_fallthru
      _
    // Predicated region
    $region18: #{schetnet_forward.1} parent=1 // pred_check
      _
    $region19: #{schetnet_forward.1} parent=1 // pred_check_branch
      %21 = sbr.rel (0) target = $region21
    $region20: #{schetnet_forward.1} parent=1 // pred_region
      _
    $region21: #{schetnet_forward.1} parent=1 // pred_fallthru
      _
    // Predicated region
    $region22: #{schetnet_forward.1} parent=1 // pred_check
      _
    $region23: #{schetnet_forward.1} parent=1 // pred_check_branch
      %23 = sbr.rel (0) target = $region25
    $region24: #{schetnet_forward.1} parent=1 // pred_region
      _
    $region25: #{schetnet_forward.1} parent=1 // pred_fallthru
      _
    %v25 = vld [vmem:[%s0] sm:$0xff]
    %v26 = vld [vmem:[%s0 + $0x8] sm:$0xff]
    %v27 = vld [vmem:[%s4] sm:$0x1]
    %v28 = vld [vmem:[%s4 + $0x1] sm:$0x1]
    %vm29 = vcmask 31744
    %v30 = vsel %vm29, %v25, 0.0
    %v31 = vsel %vm29, %v26, 0.0
    %v32 = vadd.f32 %v30, %v31
    %v33 = vrot.slane %v32, 4
    %v34 = vadd.f32 %v32, %v33
    %v35 = vrot.slane %v34, 2
    %v36 = vadd.f32 %v34, %v35
    %v37 = vrot.slane %v36, 1
    %v38 = vadd.f32 %v36, %v37
    %v39 = vrcp.pop 16.0
    %v40 = vmul.f32 %v38, %v39
    %v41 = vsub.f32 %v25, %v40
    %v42 = vsub.f32 %v26, %v40
    %v43 = vmul.f32 %v41, %v41
    %v44 = vmul.f32 %v42, %v42
    %v45 = vsel %vm29, %v43, 0.0
    %v46 = vsel %vm29, %v44, 0.0
    %v47 = vadd.f32 %v45, %v46
    %v48 = vrot.slane %v47, 4
    %v49 = vadd.f32 %v47, %v48
    %v50 = vrot.slane %v49, 2
    %v51 = vadd.f32 %v49, %v50
    %v52 = vrot.slane %v51, 1
    %v53 = vadd.f32 %v51, %v52
    %v54 = vmul.f32 %v53, %v39
    %v55 = vadd.f32 %v54, 1e-05
    %v56 = vrsqrt.pop %v55
    %v57 = vmul.f32 %v27, %v56
    %v58 = vlaneseq
    %v59 = vshrl.u32 %v58, 7
    %v60 = vsub.s32 0, %v59
    %v61 = vrot.slane %v57, %v60
    %v62 = vmul.f32 %v41, %v61
    %v63 = vmul.f32 %v42, %v61
    %v64 = vlaneseq
    %v65 = vshrl.u32 %v64, 7
    %v66 = vsub.s32 0, %v65
    %v67 = vrot.slane %v28, %v66
    %v68 = vadd.f32 %v62, %v67
    %v69 = vadd.f32 %v63, %v67
    %v70 = vld [vmem:[%s1] sm:$0xff]
    %v71 = vld [vmem:[%s1 + $0x8] sm:$0xff]
    %v72 = vld [vmem:[%s1 + $0x10] sm:$0xff]
    %v73 = vld [vmem:[%s1 + $0x18] sm:$0xff]
    %v74 = vld [vmem:[%s4 + $0x2] sm:$0x1]
    %v75 = vld [vmem:[%s4 + $0x3] sm:$0x1]
    %vm76 = vcmask 23552
    %v77 = vsel %vm76, %v70, 0.0
    %v78 = vsel %vm76, %v71, 0.0
    %v79 = vadd.f32 %v77, %v78
    %v80 = vsel %vm76, %v72, 0.0
    %v81 = vadd.f32 %v79, %v80
    %v82 = vsel %vm76, %v73, 0.0
    %v83 = vadd.f32 %v81, %v82
    %v84 = vrot.slane %v83, 4
    %v85 = vadd.f32 %v83, %v84
    %v86 = vrot.slane %v85, 2
    %v87 = vadd.f32 %v85, %v86
    %v88 = vrot.slane %v87, 1
    %v89 = vadd.f32 %v87, %v88
    %v90 = vrcp.pop 32.0
    %v91 = vmul.f32 %v89, %v90
    %v92 = vsub.f32 %v70, %v91
    %v93 = vsub.f32 %v71, %v91
    %v94 = vsub.f32 %v72, %v91
    %v95 = vsub.f32 %v73, %v91
    %v96 = vmul.f32 %v92, %v92
    %v97 = vmul.f32 %v93, %v93
    %v98 = vmul.f32 %v94, %v94
    %v99 = vmul.f32 %v95, %v95
    %v100 = vsel %vm76, %v96, 0.0
    %v101 = vsel %vm76, %v97, 0.0
    %v102 = vadd.f32 %v100, %v101
    %v103 = vsel %vm76, %v98, 0.0
    %v104 = vadd.f32 %v102, %v103
    %v105 = vsel %vm76, %v99, 0.0
    %v106 = vadd.f32 %v104, %v105
    %v107 = vrot.slane %v106, 4
    %v108 = vadd.f32 %v106, %v107
    %v109 = vrot.slane %v108, 2
    %v110 = vadd.f32 %v108, %v109
    %v111 = vrot.slane %v110, 1
    %v112 = vadd.f32 %v110, %v111
    %v113 = vmul.f32 %v112, %v90
    %v114 = vadd.f32 %v113, 1e-05
    %v115 = vrsqrt.pop %v114
    %v116 = vmul.f32 %v74, %v115
    %v117 = vlaneseq
    %v118 = vshrl.u32 %v117, 7
    %v119 = vsub.s32 0, %v118
    %v120 = vrot.slane %v116, %v119
    %v121 = vmul.f32 %v92, %v120
    %v122 = vmul.f32 %v93, %v120
    %v123 = vmul.f32 %v94, %v120
    %v124 = vmul.f32 %v95, %v120
    %v125 = vlaneseq
    %v126 = vshrl.u32 %v125, 7
    %v127 = vsub.s32 0, %v126
    %v128 = vrot.slane %v75, %v127
    %v129 = vadd.f32 %v121, %v128
    %v130 = vadd.f32 %v122, %v128
    %v131 = vadd.f32 %v123, %v128
    %v132 = vadd.f32 %v124, %v128
    %v133 = vld [vmem:[%s5] sm:$0x3]
    %v134 = vpack.c.bf16 %v69, %v68
    %v136 = vsel %vm29, %v134, 0
    %vm138 = vcmask 1041408
    %v140 = vsel %vm138, %v133, 0
    %142 = vmatprep.subr.bf16.mxu0 0
    %143 = vmatpush1.bf16.msra.mxu0 %v140
    %144 = vmatprep.subr.bf16.mxu0 0
    %145 = vmatpush1.bf16.msra.mxu0 0
    %146 = vmatprep.subr.bf16.mxu0 0
    %147 = vmatpush1.bf16.msra.mxu0 0
    %148 = vmatprep.subr.bf16.mxu0 0
    %149 = vmatpush1.bf16.msra.mxu0 0
    %150 = vmatprep.subr.bf16.mxu0 0
    %151 = vmatpush1.bf16.msra.mxu0 0
    %152 = vmatprep.subr.bf16.mxu0 0
    %153 = vmatpush1.bf16.msra.mxu0 0
    %154 = vmatprep.subr.bf16.mxu0 0
    %155 = vmatpush1.bf16.msra.mxu0 0
    %156 = vmatprep.subr.bf16.mxu0 0
    %157 = vmatpush1.bf16.msra.mxu0 0
    %158 = vmatprep.subr.bf16.mxu0 0
    %159 = vmatpush1.bf16.msra.mxu0 0
    %160 = vmatprep.subr.bf16.mxu0 0
    %161 = vmatpush1.bf16.msra.mxu0 0
    %162 = vmatprep.subr.bf16.mxu0 0
    %163 = vmatpush1.bf16.msra.mxu0 0
    %164 = vmatprep.subr.bf16.mxu0 0
    %165 = vmatpush1.bf16.msra.mxu0 0
    %166 = vmatprep.subr.bf16.mxu0 0
    %167 = vmatpush1.bf16.msra.mxu0 0
    %168 = vmatprep.subr.bf16.mxu0 0
    %169 = vmatpush1.bf16.msra.mxu0 0
    %170 = vmatprep.subr.bf16.mxu0 0
    %171 = vmatpush1.bf16.msra.mxu0 0
    %172 = vmatprep.subr.bf16.mxu0 0
    %173 = vmatpush1.bf16.msra.mxu0 0
    %174 = vmatprep.mubr.bf16.mxu0 0
    %175 = vmatmul.mubr.bf16.gmra.mrb[0].mxu0 %v136
    %v176 = vpop.f32.mrb[0].mxu0
    %v177 = vadd.f32 0.0, %v176
    %v178 = vpop.f32.mrb[0].mxu0
    %v179 = vpop.f32.mrb[0].mxu0
    %v180 = vadd.f32 0.0, %v179
    %v181 = vpop.f32.mrb[0].mxu0
    %182 = vdwg.mxu0
    %vm183 = vcmp.ge.f32.partialorder %v177, 0.0
    %vm184 = vcmp.ge.f32.partialorder %v180, 0.0
    %v185 = vmul.f32 %v177, 0.2
    %v186 = vmul.f32 %v180, 0.2
    %v187 = vsel %vm183, %v177, %v185
    %v188 = vsel %vm184, %v180, %v186
    %v189 = vld [vmem:[%s5 + $0x8] sm:$0x3]
    %v190 = vpack.c.bf16 %v130, %v129
    %v191 = vpack.c.bf16 %v132, %v131
    %v193 = vsel %vm76, %v190, 0
    %v196 = vsel %vm76, %v191, 0
    %vm198 = vcmask 1040384
    %v199 = vsel %vm198, 4294967295, 65535
    %v200 = vsel %vm138, %v199, 0
    %v202 = vand.u32 %v189, %v200
    %204 = vmatprep.subr.bf16.mxu0 0
    %205 = vmatpush1.bf16.msra.mxu0 %v202
    %206 = vmatprep.subr.bf16.mxu0 0
    %207 = vmatpush1.bf16.msra.mxu0 0
    %208 = vmatprep.subr.bf16.mxu0 0
    %209 = vmatpush1.bf16.msra.mxu0 0
    %210 = vmatprep.subr.bf16.mxu0 0
    %211 = vmatpush1.bf16.msra.mxu0 0
    %212 = vmatprep.subr.bf16.mxu0 0
    %213 = vmatpush1.bf16.msra.mxu0 0
    %214 = vmatprep.subr.bf16.mxu0 0
    %215 = vmatpush1.bf16.msra.mxu0 0
    %216 = vmatprep.subr.bf16.mxu0 0
    %217 = vmatpush1.bf16.msra.mxu0 0
    %218 = vmatprep.subr.bf16.mxu0 0
    %219 = vmatpush1.bf16.msra.mxu0 0
    %220 = vmatprep.subr.bf16.mxu0 0
    %221 = vmatpush1.bf16.msra.mxu0 0
    %222 = vmatprep.subr.bf16.mxu0 0
    %223 = vmatpush1.bf16.msra.mxu0 0
    %224 = vmatprep.subr.bf16.mxu0 0
    %225 = vmatpush1.bf16.msra.mxu0 0
    %226 = vmatprep.subr.bf16.mxu0 0
    %227 = vmatpush1.bf16.msra.mxu0 0
    %228 = vmatprep.subr.bf16.mxu0 0
    %229 = vmatpush1.bf16.msra.mxu0 0
    %230 = vmatprep.subr.bf16.mxu0 0
    %231 = vmatpush1.bf16.msra.mxu0 0
    %232 = vmatprep.subr.bf16.mxu0 0
    %233 = vmatpush1.bf16.msra.mxu0 0
    %234 = vmatprep.subr.bf16.mxu0 0
    %235 = vmatpush1.bf16.msra.mxu0 0
    %236 = vmatprep.mubr.bf16.mxu0 0
    %237 = vmatmul.mubr.bf16.gmra.mrb[0].mxu0 %v193
    %v238 = vpop.f32.mrb[0].mxu0
    %v239 = vadd.f32 0.0, %v238
    %v240 = vpop.f32.mrb[0].mxu0
    %v241 = vpop.f32.mrb[0].mxu0
    %v242 = vadd.f32 0.0, %v241
    %v243 = vpop.f32.mrb[0].mxu0
    %244 = vmatprep.mubr.bf16.mxu0 0
    %245 = vmatmul.mubr.bf16.gmra.mrb[0].mxu0 %v196
    %v246 = vpop.f32.mrb[0].mxu0
    %v247 = vadd.f32 0.0, %v246
    %v248 = vpop.f32.mrb[0].mxu0
    %v249 = vpop.f32.mrb[0].mxu0
    %v250 = vadd.f32 0.0, %v249
    %v251 = vpop.f32.mrb[0].mxu0
    %252 = vdwg.mxu0
    %vm253 = vcmp.ge.f32.partialorder %v239, 0.0
    %vm254 = vcmp.ge.f32.partialorder %v242, 0.0
    %vm255 = vcmp.ge.f32.partialorder %v247, 0.0
    %vm256 = vcmp.ge.f32.partialorder %v250, 0.0
    %v257 = vmul.f32 %v239, 0.2
    %v258 = vmul.f32 %v242, 0.2
    %v259 = vmul.f32 %v247, 0.2
    %v260 = vmul.f32 %v250, 0.2
    %v261 = vsel %vm253, %v239, %v257
    %v262 = vsel %vm254, %v242, %v258
    %v263 = vsel %vm255, %v247, %v259
    %v264 = vsel %vm256, %v250, %v260
    %v265 = vld [vmem:[%s3] sm:$0xf]
    %v266 = vld [vmem:[%s3 + $0x4] sm:$0xf]
    %v267 = vld [vmem:[%s3 + $0x8] sm:$0xf]
    %v268 = vld [vmem:[%s3 + $0xc] sm:$0xf]
    %v269 = vld [vmem:[%s3 + $0x10] sm:$0xf]
    %v270 = vld [vmem:[%s3 + $0x14] sm:$0xf]
    %v271 = vld [vmem:[%s5 + $0x10] sm:$0xf]
    %v272 = vld [vmem:[%s5 + $0x14] sm:$0xf]
    %v273 = vld [vmem:[%s5 + $0x18] sm:$0xf]
    %v274 = vld [vmem:[%s5 + $0x1c] sm:$0xf]
    %v275 = vld [vmem:[%s4 + $0x8] sm:$0x1]
    %v276 = vpack.c.bf16 %v188, %v187
    %v277 = vpack.c.bf16 %v262, %v261
    %v278 = vpack.c.bf16 %v264, %v263
    %v283 = vunpack.c.l.b16 %v271
    %v284 = vunpack.c.l.b16 %v272
    %v285 = vunpack.c.l.b16 %v273
    %v286 = vunpack.c.l.b16 %v274
    %v287 = vpack.c.b16 %v284, %v283
    %v288 = vpack.c.b16 %v286, %v285
    %vm291 = vcmask 261120
    %v293 = vsel %vm291, %v276, 0
    %v296 = vsel %vm291, %v277, 0
    %v299 = vsel %vm291, %v278, 0
    %301 = vmatprep.subr.bf16.mxu0 0
    %302 = vmatpush1.bf16.msra.mxu0 %v287
    %303 = vmatprep.subr.bf16.mxu0 0
    %304 = vmatpush1.bf16.msra.mxu0 %v288
    %305 = vmatprep.subr.bf16.mxu0 0
    %306 = vmatpush1.bf16.msra.mxu0 0
    %307 = vmatprep.subr.bf16.mxu0 0
    %308 = vmatpush1.bf16.msra.mxu0 0
    %309 = vmatprep.subr.bf16.mxu0 0
    %310 = vmatpush1.bf16.msra.mxu0 0
    %311 = vmatprep.subr.bf16.mxu0 0
    %312 = vmatpush1.bf16.msra.mxu0 0
    %313 = vmatprep.subr.bf16.mxu0 0
    %314 = vmatpush1.bf16.msra.mxu0 0
    %315 = vmatprep.subr.bf16.mxu0 0
    %316 = vmatpush1.bf16.msra.mxu0 0
    %317 = vmatprep.subr.bf16.mxu0 0
    %318 = vmatpush1.bf16.msra.mxu0 0
    %319 = vmatprep.subr.bf16.mxu0 0
    %320 = vmatpush1.bf16.msra.mxu0 0
    %321 = vmatprep.subr.bf16.mxu0 0
    %322 = vmatpush1.bf16.msra.mxu0 0
    %323 = vmatprep.subr.bf16.mxu0 0
    %324 = vmatpush1.bf16.msra.mxu0 0
    %325 = vmatprep.subr.bf16.mxu0 0
    %326 = vmatpush1.bf16.msra.mxu0 0
    %327 = vmatprep.subr.bf16.mxu0 0
    %328 = vmatpush1.bf16.msra.mxu0 0
    %329 = vmatprep.subr.bf16.mxu0 0
    %330 = vmatpush1.bf16.msra.mxu0 0
    %331 = vmatprep.subr.bf16.mxu0 0
    %332 = vmatpush1.bf16.msra.mxu0 0
    %333 = vmatprep.mubr.bf16.mxu0 0
    %334 = vmatmul.mubr.bf16.gmra.mrb[0].mxu0 %v293
    %v335 = vpop.f32.mrb[0].mxu0
    %v336 = vadd.f32 0.0, %v335
    %v337 = vpop.f32.mrb[0].mxu0
    %v338 = vpop.f32.mrb[0].mxu0
    %v339 = vadd.f32 0.0, %v338
    %v340 = vpop.f32.mrb[0].mxu0
    %341 = vmatprep.mubr.bf16.mxu0 0
    %342 = vmatmul.mubr.bf16.gmra.mrb[0].mxu0 %v296
    %v343 = vpop.f32.mrb[0].mxu0
    %v344 = vadd.f32 0.0, %v343
    %v345 = vpop.f32.mrb[0].mxu0
    %v346 = vpop.f32.mrb[0].mxu0
    %v347 = vadd.f32 0.0, %v346
    %v348 = vpop.f32.mrb[0].mxu0
    %349 = vmatprep.mubr.bf16.mxu0 0
    %350 = vmatmul.mubr.bf16.gmra.mrb[0].mxu0 %v299
    %v351 = vpop.f32.mrb[0].mxu0
    %v352 = vadd.f32 0.0, %v351
    %v353 = vpop.f32.mrb[0].mxu0
    %v354 = vpop.f32.mrb[0].mxu0
    %v355 = vadd.f32 0.0, %v354
    %v356 = vpop.f32.mrb[0].mxu0
    %357 = vdwg.mxu0
    %v358 = vpack.c.bf16 %v339, %v336
    %v359 = vpack.c.bf16 %v347, %v344
    %v360 = vpack.c.bf16 %v355, %v352
    %v361 = vlaneseq
    %v362 = vshrl.u32 %v361, 7
    %v363 = vsub.s32 0, %v362
    %v364 = vrot.slane %v275, %v363
    %v371 = vunpack.c.l.b16 %v265
    %v372 = vunpack.c.l.b16 %v266
    %v373 = vunpack.c.l.b16 %v267
    %v374 = vunpack.c.l.b16 %v268
    %v375 = vunpack.c.l.b16 %v269
    %v376 = vunpack.c.l.b16 %v270
    %v377 = vpack.c.b16 %v372, %v371
    %v378 = vpack.c.b16 %v374, %v373
    %v379 = vpack.c.b16 %v376, %v375
    %vm380 = vcmask 392192
    %v382 = vsel %vm380, %v377, 0
    %v385 = vsel %vm380, %v378, 0
    %v388 = vsel %vm380, %v379, 0
    %390 = vmatprep.subr.bf16.mxu0 0
    %391 = vmatpush1.bf16.msra.mxu0 %v358
    %392 = vmatprep.subr.bf16.mxu0 0
    %393 = vmatpush1.bf16.msra.mxu0 %v359
    %394 = vmatprep.subr.bf16.mxu0 0
    %395 = vmatpush1.bf16.msra.mxu0 %v360
    %396 = vmatprep.subr.bf16.mxu0 0
    %397 = vmatpush1.bf16.msra.mxu0 0
    %398 = vmatprep.subr.bf16.mxu0 0
    %399 = vmatpush1.bf16.msra.mxu0 0
    %400 = vmatprep.subr.bf16.mxu0 0
    %401 = vmatpush1.bf16.msra.mxu0 0
    %402 = vmatprep.subr.bf16.mxu0 0
    %403 = vmatpush1.bf16.msra.mxu0 0
    %404 = vmatprep.subr.bf16.mxu0 0
    %405 = vmatpush1.bf16.msra.mxu0 0
    %406 = vmatprep.subr.bf16.mxu0 0
    %407 = vmatpush1.bf16.msra.mxu0 0
    %408 = vmatprep.subr.bf16.mxu0 0
    %409 = vmatpush1.bf16.msra.mxu0 0
    %410 = vmatprep.subr.bf16.mxu0 0
    %411 = vmatpush1.bf16.msra.mxu0 0
    %412 = vmatprep.subr.bf16.mxu0 0
    %413 = vmatpush1.bf16.msra.mxu0 0
    %414 = vmatprep.subr.bf16.mxu0 0
    %415 = vmatpush1.bf16.msra.mxu0 0
    %416 = vmatprep.subr.bf16.mxu0 0
    %417 = vmatpush1.bf16.msra.mxu0 0
    %418 = vmatprep.subr.bf16.mxu0 0
    %419 = vmatpush1.bf16.msra.mxu0 0
    %420 = vmatprep.subr.bf16.mxu0 0
    %421 = vmatpush1.bf16.msra.mxu0 0
    %422 = vmatprep.mubr.bf16.mxu0 0
    %423 = vmatmul.mubr.bf16.gmra.mrb[0].mxu0 %v382
    %v424 = vpop.f32.mrb[0].mxu0
    %v425 = vadd.f32 %v364, %v424
    %v426 = vpop.f32.mrb[0].mxu0
    %v427 = vpop.f32.mrb[0].mxu0
    %v428 = vadd.f32 %v364, %v427
    %v429 = vpop.f32.mrb[0].mxu0
    %430 = vmatprep.mubr.bf16.mxu0 0
    %431 = vmatmul.mubr.bf16.gmra.mrb[0].mxu0 %v385
    %v432 = vpop.f32.mrb[0].mxu0
    %v433 = vadd.f32 %v364, %v432
    %v434 = vpop.f32.mrb[0].mxu0
    %v435 = vpop.f32.mrb[0].mxu0
    %v436 = vadd.f32 %v364, %v435
    %v437 = vpop.f32.mrb[0].mxu0
    %438 = vmatprep.mubr.bf16.mxu0 0
    %439 = vmatmul.mubr.bf16.gmra.mrb[0].mxu0 %v388
    %v440 = vpop.f32.mrb[0].mxu0
    %v441 = vadd.f32 %v364, %v440
    %v442 = vpop.f32.mrb[0].mxu0
    %v443 = vpop.f32.mrb[0].mxu0
    %v444 = vadd.f32 %v364, %v443
    %v445 = vpop.f32.mrb[0].mxu0
    %446 = vdwg.mxu0
    %vm447 = vcmp.ge.f32.partialorder %v425, 0.0
    %vm448 = vcmp.ge.f32.partialorder %v428, 0.0
    %vm449 = vcmp.ge.f32.partialorder %v433, 0.0
    %vm450 = vcmp.ge.f32.partialorder %v436, 0.0
    %vm451 = vcmp.ge.f32.partialorder %v441, 0.0
    %vm452 = vcmp.ge.f32.partialorder %v444, 0.0
    %v453 = vmul.f32 %v425, 0.2
    %v454 = vmul.f32 %v428, 0.2
    %v455 = vmul.f32 %v433, 0.2
    %v456 = vmul.f32 %v436, 0.2
    %v457 = vmul.f32 %v441, 0.2
    %v458 = vmul.f32 %v444, 0.2
    %v459 = vsel %vm447, %v425, %v453
    %v460 = vsel %vm448, %v428, %v454
    %v461 = vsel %vm449, %v433, %v455
    %v462 = vsel %vm450, %v436, %v456
    %v463 = vsel %vm451, %v441, %v457
    %v464 = vsel %vm452, %v444, %v458
    %v465 = vadd.f32 %v187, %v459
    %v466 = vadd.f32 %v188, %v460
    %v467 = vadd.f32 %v261, %v461
    %v468 = vadd.f32 %v262, %v462
    %v469 = vadd.f32 %v263, %v463
    %v470 = vadd.f32 %v264, %v464
    %v471 = vld [vmem:[%s5 + $0x20] sm:$0xf]
    %v472 = vld [vmem:[%s5 + $0x24] sm:$0xf]
    %v473 = vld [vmem:[%s5 + $0x28] sm:$0xf]
    %v474 = vld [vmem:[%s5 + $0x2c] sm:$0xf]
    %v475 = vld [vmem:[%s4 + $0x9] sm:$0x1]
    %v476 = vpack.c.bf16 %v466, %v465
    %v477 = vpack.c.bf16 %v468, %v467
    %v478 = vpack.c.bf16 %v470, %v469
    %v483 = vunpack.c.l.b16 %v471
    %v484 = vunpack.c.l.b16 %v472
    %v485 = vunpack.c.l.b16 %v473
    %v486 = vunpack.c.l.b16 %v474
    %v487 = vpack.c.b16 %v484, %v483
    %v488 = vpack.c.b16 %v486, %v485
    %v492 = vsel %vm291, %v476, 0
    %v495 = vsel %vm291, %v477, 0
    %v498 = vsel %vm291, %v478, 0
    %500 = vmatprep.subr.bf16.mxu0 0
    %501 = vmatpush1.bf16.msra.mxu0 %v487
    %502 = vmatprep.subr.bf16.mxu0 0
    %503 = vmatpush1.bf16.msra.mxu0 %v488
    %504 = vmatprep.subr.bf16.mxu0 0
    %505 = vmatpush1.bf16.msra.mxu0 0
    %506 = vmatprep.subr.bf16.mxu0 0
    %507 = vmatpush1.bf16.msra.mxu0 0
    %508 = vmatprep.subr.bf16.mxu0 0
    %509 = vmatpush1.bf16.msra.mxu0 0
    %510 = vmatprep.subr.bf16.mxu0 0
    %511 = vmatpush1.bf16.msra.mxu0 0
    %512 = vmatprep.subr.bf16.mxu0 0
    %513 = vmatpush1.bf16.msra.mxu0 0
    %514 = vmatprep.subr.bf16.mxu0 0
    %515 = vmatpush1.bf16.msra.mxu0 0
    %516 = vmatprep.subr.bf16.mxu0 0
    %517 = vmatpush1.bf16.msra.mxu0 0
    %518 = vmatprep.subr.bf16.mxu0 0
    %519 = vmatpush1.bf16.msra.mxu0 0
    %520 = vmatprep.subr.bf16.mxu0 0
    %521 = vmatpush1.bf16.msra.mxu0 0
    %522 = vmatprep.subr.bf16.mxu0 0
    %523 = vmatpush1.bf16.msra.mxu0 0
    %524 = vmatprep.subr.bf16.mxu0 0
    %525 = vmatpush1.bf16.msra.mxu0 0
    %526 = vmatprep.subr.bf16.mxu0 0
    %527 = vmatpush1.bf16.msra.mxu0 0
    %528 = vmatprep.subr.bf16.mxu0 0
    %529 = vmatpush1.bf16.msra.mxu0 0
    %530 = vmatprep.subr.bf16.mxu0 0
    %531 = vmatpush1.bf16.msra.mxu0 0
    %532 = vmatprep.mubr.bf16.mxu0 0
    %533 = vmatmul.mubr.bf16.gmra.mrb[0].mxu0 %v492
    %v534 = vpop.f32.mrb[0].mxu0
    %v535 = vadd.f32 0.0, %v534
    %v536 = vpop.f32.mrb[0].mxu0
    %v537 = vpop.f32.mrb[0].mxu0
    %v538 = vadd.f32 0.0, %v537
    %v539 = vpop.f32.mrb[0].mxu0
    %540 = vmatprep.mubr.bf16.mxu0 0
    %541 = vmatmul.mubr.bf16.gmra.mrb[0].mxu0 %v495
    %v542 = vpop.f32.mrb[0].mxu0
    %v543 = vadd.f32 0.0, %v542
    %v544 = vpop.f32.mrb[0].mxu0
    %v545 = vpop.f32.mrb[0].mxu0
    %v546 = vadd.f32 0.0, %v545
    %v547 = vpop.f32.mrb[0].mxu0
    %548 = vmatprep.mubr.bf16.mxu0 0
    %549 = vmatmul.mubr.bf16.gmra.mrb[0].mxu0 %v498
    %v550 = vpop.f32.mrb[0].mxu0
    %v551 = vadd.f32 0.0, %v550
    %v552 = vpop.f32.mrb[0].mxu0
    %v553 = vpop.f32.mrb[0].mxu0
    %v554 = vadd.f32 0.0, %v553
    %v555 = vpop.f32.mrb[0].mxu0
    %556 = vdwg.mxu0
    %v557 = vpack.c.bf16 %v538, %v535
    %v558 = vpack.c.bf16 %v546, %v543
    %v559 = vpack.c.bf16 %v554, %v551
    %v560 = vlaneseq
    %v561 = vshrl.u32 %v560, 7
    %v562 = vsub.s32 0, %v561
    %v563 = vrot.slane %v475, %v562
    %564 = vmatprep.subr.bf16.mxu0 0
    %565 = vmatpush1.bf16.msra.mxu0 %v557
    %566 = vmatprep.subr.bf16.mxu0 0
    %567 = vmatpush1.bf16.msra.mxu0 %v558
    %568 = vmatprep.subr.bf16.mxu0 0
    %569 = vmatpush1.bf16.msra.mxu0 %v559
    %570 = vmatprep.subr.bf16.mxu0 0
    %571 = vmatpush1.bf16.msra.mxu0 0
    %572 = vmatprep.subr.bf16.mxu0 0
    %573 = vmatpush1.bf16.msra.mxu0 0
    %574 = vmatprep.subr.bf16.mxu0 0
    %575 = vmatpush1.bf16.msra.mxu0 0
    %576 = vmatprep.subr.bf16.mxu0 0
    %577 = vmatpush1.bf16.msra.mxu0 0
    %578 = vmatprep.subr.bf16.mxu0 0
    %579 = vmatpush1.bf16.msra.mxu0 0
    %580 = vmatprep.subr.bf16.mxu0 0
    %581 = vmatpush1.bf16.msra.mxu0 0
    %582 = vmatprep.subr.bf16.mxu0 0
    %583 = vmatpush1.bf16.msra.mxu0 0
    %584 = vmatprep.subr.bf16.mxu0 0
    %585 = vmatpush1.bf16.msra.mxu0 0
    %586 = vmatprep.subr.bf16.mxu0 0
    %587 = vmatpush1.bf16.msra.mxu0 0
    %588 = vmatprep.subr.bf16.mxu0 0
    %589 = vmatpush1.bf16.msra.mxu0 0
    %590 = vmatprep.subr.bf16.mxu0 0
    %591 = vmatpush1.bf16.msra.mxu0 0
    %592 = vmatprep.subr.bf16.mxu0 0
    %593 = vmatpush1.bf16.msra.mxu0 0
    %594 = vmatprep.subr.bf16.mxu0 0
    %595 = vmatpush1.bf16.msra.mxu0 0
    %596 = vmatprep.mubr.bf16.mxu0 0
    %597 = vmatmul.mubr.bf16.gmra.mrb[0].mxu0 %v382
    %v598 = vpop.f32.mrb[0].mxu0
    %v599 = vadd.f32 %v563, %v598
    %v600 = vpop.f32.mrb[0].mxu0
    %v601 = vpop.f32.mrb[0].mxu0
    %v602 = vadd.f32 %v563, %v601
    %v603 = vpop.f32.mrb[0].mxu0
    %604 = vmatprep.mubr.bf16.mxu0 0
    %605 = vmatmul.mubr.bf16.gmra.mrb[0].mxu0 %v385
    %v606 = vpop.f32.mrb[0].mxu0
    %v607 = vadd.f32 %v563, %v606
    %v608 = vpop.f32.mrb[0].mxu0
    %v609 = vpop.f32.mrb[0].mxu0
    %v610 = vadd.f32 %v563, %v609
    %v611 = vpop.f32.mrb[0].mxu0
    %612 = vmatprep.mubr.bf16.mxu0 0
    %613 = vmatmul.mubr.bf16.gmra.mrb[0].mxu0 %v388
    %v614 = vpop.f32.mrb[0].mxu0
    %v615 = vadd.f32 %v563, %v614
    %v616 = vpop.f32.mrb[0].mxu0
    %v617 = vpop.f32.mrb[0].mxu0
    %v618 = vadd.f32 %v563, %v617
    %v619 = vpop.f32.mrb[0].mxu0
    %620 = vdwg.mxu0
    %vm621 = vcmp.ge.f32.partialorder %v599, 0.0
    %vm622 = vcmp.ge.f32.partialorder %v602, 0.0
    %vm623 = vcmp.ge.f32.partialorder %v607, 0.0
    %vm624 = vcmp.ge.f32.partialorder %v610, 0.0
    %vm625 = vcmp.ge.f32.partialorder %v615, 0.0
    %vm626 = vcmp.ge.f32.partialorder %v618, 0.0
    %v627 = vmul.f32 %v599, 0.2
    %v628 = vmul.f32 %v602, 0.2
    %v629 = vmul.f32 %v607, 0.2
    %v630 = vmul.f32 %v610, 0.2
    %v631 = vmul.f32 %v615, 0.2
    %v632 = vmul.f32 %v618, 0.2
    %v633 = vsel %vm621, %v599, %v627
    %v634 = vsel %vm622, %v602, %v628
    %v635 = vsel %vm623, %v607, %v629
    %v636 = vsel %vm624, %v610, %v630
    %v637 = vsel %vm625, %v615, %v631
    %v638 = vsel %vm626, %v618, %v632
    %v639 = vadd.f32 %v465, %v633
    %v640 = vadd.f32 %v466, %v634
    %v641 = vadd.f32 %v467, %v635
    %v642 = vadd.f32 %v468, %v636
    %v643 = vadd.f32 %v469, %v637
    %v644 = vadd.f32 %v470, %v638
    %v645 = vld [vmem:[%s5 + $0x30] sm:$0xf]
    %v646 = vld [vmem:[%s5 + $0x34] sm:$0xf]
    %v647 = vld [vmem:[%s5 + $0x38] sm:$0xf]
    %v648 = vld [vmem:[%s5 + $0x3c] sm:$0xf]
    %v649 = vld [vmem:[%s4 + $0xa] sm:$0x1]
    %v650 = vpack.c.bf16 %v640, %v639
    %v651 = vpack.c.bf16 %v642, %v641
    %v652 = vpack.c.bf16 %v644, %v643
    %v657 = vunpack.c.l.b16 %v645
    %v658 = vunpack.c.l.b16 %v646
    %v659 = vunpack.c.l.b16 %v647
    %v660 = vunpack.c.l.b16 %v648
    %v661 = vpack.c.b16 %v658, %v657
    %v662 = vpack.c.b16 %v660, %v659
    %v666 = vsel %vm291, %v650, 0
    %v669 = vsel %vm291, %v651, 0
    %v672 = vsel %vm291, %v652, 0
    %674 = vmatprep.subr.bf16.mxu0 0
    %675 = vmatpush1.bf16.msra.mxu0 %v661
    %676 = vmatprep.subr.bf16.mxu0 0
    %677 = vmatpush1.bf16.msra.mxu0 %v662
    %678 = vmatprep.subr.bf16.mxu0 0
    %679 = vmatpush1.bf16.msra.mxu0 0
    %680 = vmatprep.subr.bf16.mxu0 0
    %681 = vmatpush1.bf16.msra.mxu0 0
    %682 = vmatprep.subr.bf16.mxu0 0
    %683 = vmatpush1.bf16.msra.mxu0 0
    %684 = vmatprep.subr.bf16.mxu0 0
    %685 = vmatpush1.bf16.msra.mxu0 0
    %686 = vmatprep.subr.bf16.mxu0 0
    %687 = vmatpush1.bf16.msra.mxu0 0
    %688 = vmatprep.subr.bf16.mxu0 0
    %689 = vmatpush1.bf16.msra.mxu0 0
    %690 = vmatprep.subr.bf16.mxu0 0
    %691 = vmatpush1.bf16.msra.mxu0 0
    %692 = vmatprep.subr.bf16.mxu0 0
    %693 = vmatpush1.bf16.msra.mxu0 0
    %694 = vmatprep.subr.bf16.mxu0 0
    %695 = vmatpush1.bf16.msra.mxu0 0
    %696 = vmatprep.subr.bf16.mxu0 0
    %697 = vmatpush1.bf16.msra.mxu0 0
    %698 = vmatprep.subr.bf16.mxu0 0
    %699 = vmatpush1.bf16.msra.mxu0 0
    %700 = vmatprep.subr.bf16.mxu0 0
    %701 = vmatpush1.bf16.msra.mxu0 0
    %702 = vmatprep.subr.bf16.mxu0 0
    %703 = vmatpush1.bf16.msra.mxu0 0
    %704 = vmatprep.subr.bf16.mxu0 0
    %705 = vmatpush1.bf16.msra.mxu0 0
    %706 = vmatprep.mubr.bf16.mxu0 0
    %707 = vmatmul.mubr.bf16.gmra.mrb[0].mxu0 %v666
    %v708 = vpop.f32.mrb[0].mxu0
    %v709 = vadd.f32 0.0, %v708
    %v710 = vpop.f32.mrb[0].mxu0
    %v711 = vpop.f32.mrb[0].mxu0
    %v712 = vadd.f32 0.0, %v711
    %v713 = vpop.f32.mrb[0].mxu0
    %714 = vmatprep.mubr.bf16.mxu0 0
    %715 = vmatmul.mubr.bf16.gmra.mrb[0].mxu0 %v669
    %v716 = vpop.f32.mrb[0].mxu0
    %v717 = vadd.f32 0.0, %v716
    %v718 = vpop.f32.mrb[0].mxu0
    %v719 = vpop.f32.mrb[0].mxu0
    %v720 = vadd.f32 0.0, %v719
    %v721 = vpop.f32.mrb[0].mxu0
    %722 = vmatprep.mubr.bf16.mxu0 0
    %723 = vmatmul.mubr.bf16.gmra.mrb[0].mxu0 %v672
    %v724 = vpop.f32.mrb[0].mxu0
    %v725 = vadd.f32 0.0, %v724
    %v726 = vpop.f32.mrb[0].mxu0
    %v727 = vpop.f32.mrb[0].mxu0
    %v728 = vadd.f32 0.0, %v727
    %v729 = vpop.f32.mrb[0].mxu0
    %730 = vdwg.mxu0
    %v731 = vpack.c.bf16 %v712, %v709
    %v732 = vpack.c.bf16 %v720, %v717
    %v733 = vpack.c.bf16 %v728, %v725
    %v734 = vlaneseq
    %v735 = vshrl.u32 %v734, 7
    %v736 = vsub.s32 0, %v735
    %v737 = vrot.slane %v649, %v736
    %738 = vmatprep.subr.bf16.mxu0 0
    %739 = vmatpush1.bf16.msra.mxu0 %v731
    %740 = vmatprep.subr.bf16.mxu0 0
    %741 = vmatpush1.bf16.msra.mxu0 %v732
    %742 = vmatprep.subr.bf16.mxu0 0
    %743 = vmatpush1.bf16.msra.mxu0 %v733
    %744 = vmatprep.subr.bf16.mxu0 0
    %745 = vmatpush1.bf16.msra.mxu0 0
    %746 = vmatprep.subr.bf16.mxu0 0
    %747 = vmatpush1.bf16.msra.mxu0 0
    %748 = vmatprep.subr.bf16.mxu0 0
    %749 = vmatpush1.bf16.msra.mxu0 0
    %750 = vmatprep.subr.bf16.mxu0 0
    %751 = vmatpush1.bf16.msra.mxu0 0
    %752 = vmatprep.subr.bf16.mxu0 0
    %753 = vmatpush1.bf16.msra.mxu0 0
    %754 = vmatprep.subr.bf16.mxu0 0
    %755 = vmatpush1.bf16.msra.mxu0 0
    %756 = vmatprep.subr.bf16.mxu0 0
    %757 = vmatpush1.bf16.msra.mxu0 0
    %758 = vmatprep.subr.bf16.mxu0 0
    %759 = vmatpush1.bf16.msra.mxu0 0
    %760 = vmatprep.subr.bf16.mxu0 0
    %761 = vmatpush1.bf16.msra.mxu0 0
    %762 = vmatprep.subr.bf16.mxu0 0
    %763 = vmatpush1.bf16.msra.mxu0 0
    %764 = vmatprep.subr.bf16.mxu0 0
    %765 = vmatpush1.bf16.msra.mxu0 0
    %766 = vmatprep.subr.bf16.mxu0 0
    %767 = vmatpush1.bf16.msra.mxu0 0
    %768 = vmatprep.subr.bf16.mxu0 0
    %769 = vmatpush1.bf16.msra.mxu0 0
    %770 = vmatprep.mubr.bf16.mxu0 0
    %771 = vmatmul.mubr.bf16.gmra.mrb[0].mxu0 %v382
    %v772 = vpop.f32.mrb[0].mxu0
    %v773 = vadd.f32 %v737, %v772
    %v774 = vpop.f32.mrb[0].mxu0
    %v775 = vpop.f32.mrb[0].mxu0
    %v776 = vadd.f32 %v737, %v775
    %v777 = vpop.f32.mrb[0].mxu0
    %778 = vmatprep.mubr.bf16.mxu0 0
    %779 = vmatmul.mubr.bf16.gmra.mrb[0].mxu0 %v385
    %v780 = vpop.f32.mrb[0].mxu0
    %v781 = vadd.f32 %v737, %v780
    %v782 = vpop.f32.mrb[0].mxu0
    %v783 = vpop.f32.mrb[0].mxu0
    %v784 = vadd.f32 %v737, %v783
    %v785 = vpop.f32.mrb[0].mxu0
    %786 = vmatprep.mubr.bf16.mxu0 0
    %787 = vmatmul.mubr.bf16.gmra.mrb[0].mxu0 %v388
    %v788 = vpop.f32.mrb[0].mxu0
    %v789 = vadd.f32 %v737, %v788
    %v790 = vpop.f32.mrb[0].mxu0
    %v791 = vpop.f32.mrb[0].mxu0
    %v792 = vadd.f32 %v737, %v791
    %v793 = vpop.f32.mrb[0].mxu0
    %794 = vdwg.mxu0
    %vm795 = vcmp.ge.f32.partialorder %v773, 0.0
    %vm796 = vcmp.ge.f32.partialorder %v776, 0.0
    %vm797 = vcmp.ge.f32.partialorder %v781, 0.0
    %vm798 = vcmp.ge.f32.partialorder %v784, 0.0
    %vm799 = vcmp.ge.f32.partialorder %v789, 0.0
    %vm800 = vcmp.ge.f32.partialorder %v792, 0.0
    %v801 = vmul.f32 %v773, 0.2
    %v802 = vmul.f32 %v776, 0.2
    %v803 = vmul.f32 %v781, 0.2
    %v804 = vmul.f32 %v784, 0.2
    %v805 = vmul.f32 %v789, 0.2
    %v806 = vmul.f32 %v792, 0.2
    %v807 = vsel %vm795, %v773, %v801
    %v808 = vsel %vm796, %v776, %v802
    %v809 = vsel %vm797, %v781, %v803
    %v810 = vsel %vm798, %v784, %v804
    %v811 = vsel %vm799, %v789, %v805
    %v812 = vsel %vm800, %v792, %v806
    %v813 = vadd.f32 %v639, %v807
    %v814 = vadd.f32 %v640, %v808
    %v815 = vadd.f32 %v641, %v809
    %v816 = vadd.f32 %v642, %v810
    %v817 = vadd.f32 %v643, %v811
    %v818 = vadd.f32 %v644, %v812
    %v819 = vld [vmem:[%s5 + $0x40] sm:$0xf]
    %v820 = vld [vmem:[%s5 + $0x44] sm:$0xf]
    %v821 = vld [vmem:[%s5 + $0x48] sm:$0xf]
    %v822 = vld [vmem:[%s5 + $0x4c] sm:$0xf]
    %v823 = vld [vmem:[%s4 + $0xb] sm:$0x1]
    %v824 = vpack.c.bf16 %v814, %v813
    %v825 = vpack.c.bf16 %v816, %v815
    %v826 = vpack.c.bf16 %v818, %v817
    %v831 = vunpack.c.l.b16 %v819
    %v832 = vunpack.c.l.b16 %v820
    %v833 = vunpack.c.l.b16 %v821
    %v834 = vunpack.c.l.b16 %v822
    %v835 = vpack.c.b16 %v832, %v831
    %v836 = vpack.c.b16 %v834, %v833
    %v840 = vsel %vm291, %v824, 0
    %v843 = vsel %vm291, %v825, 0
    %v846 = vsel %vm291, %v826, 0
    %848 = vmatprep.subr.bf16.mxu0 0
    %849 = vmatpush1.bf16.msra.mxu0 %v835
    %850 = vmatprep.subr.bf16.mxu0 0
    %851 = vmatpush1.bf16.msra.mxu0 %v836
    %852 = vmatprep.subr.bf16.mxu0 0
    %853 = vmatpush1.bf16.msra.mxu0 0
    %854 = vmatprep.subr.bf16.mxu0 0
    %855 = vmatpush1.bf16.msra.mxu0 0
    %856 = vmatprep.subr.bf16.mxu0 0
    %857 = vmatpush1.bf16.msra.mxu0 0
    %858 = vmatprep.subr.bf16.mxu0 0
    %859 = vmatpush1.bf16.msra.mxu0 0
    %860 = vmatprep.subr.bf16.mxu0 0
    %861 = vmatpush1.bf16.msra.mxu0 0
    %862 = vmatprep.subr.bf16.mxu0 0
    %863 = vmatpush1.bf16.msra.mxu0 0
    %864 = vmatprep.subr.bf16.mxu0 0
    %865 = vmatpush1.bf16.msra.mxu0 0
    %866 = vmatprep.subr.bf16.mxu0 0
    %867 = vmatpush1.bf16.msra.mxu0 0
    %868 = vmatprep.subr.bf16.mxu0 0
    %869 = vmatpush1.bf16.msra.mxu0 0
    %870 = vmatprep.subr.bf16.mxu0 0
    %871 = vmatpush1.bf16.msra.mxu0 0
    %872 = vmatprep.subr.bf16.mxu0 0
    %873 = vmatpush1.bf16.msra.mxu0 0
    %874 = vmatprep.subr.bf16.mxu0 0
    %875 = vmatpush1.bf16.msra.mxu0 0
    %876 = vmatprep.subr.bf16.mxu0 0
    %877 = vmatpush1.bf16.msra.mxu0 0
    %878 = vmatprep.subr.bf16.mxu0 0
    %879 = vmatpush1.bf16.msra.mxu0 0
    %880 = vmatprep.mubr.bf16.mxu0 0
    %881 = vmatmul.mubr.bf16.gmra.mrb[0].mxu0 %v840
    %v882 = vpop.f32.mrb[0].mxu0
    %v883 = vadd.f32 0.0, %v882
    %v884 = vpop.f32.mrb[0].mxu0
    %v885 = vpop.f32.mrb[0].mxu0
    %v886 = vadd.f32 0.0, %v885
    %v887 = vpop.f32.mrb[0].mxu0
    %888 = vmatprep.mubr.bf16.mxu0 0
    %889 = vmatmul.mubr.bf16.gmra.mrb[0].mxu0 %v843
    %v890 = vpop.f32.mrb[0].mxu0
    %v891 = vadd.f32 0.0, %v890
    %v892 = vpop.f32.mrb[0].mxu0
    %v893 = vpop.f32.mrb[0].mxu0
    %v894 = vadd.f32 0.0, %v893
    %v895 = vpop.f32.mrb[0].mxu0
    %896 = vmatprep.mubr.bf16.mxu0 0
    %897 = vmatmul.mubr.bf16.gmra.mrb[0].mxu0 %v846
    %v898 = vpop.f32.mrb[0].mxu0
    %v899 = vadd.f32 0.0, %v898
    %v900 = vpop.f32.mrb[0].mxu0
    %v901 = vpop.f32.mrb[0].mxu0
    %v902 = vadd.f32 0.0, %v901
    %v903 = vpop.f32.mrb[0].mxu0
    %904 = vdwg.mxu0
    %v905 = vpack.c.bf16 %v886, %v883
    %v906 = vpack.c.bf16 %v894, %v891
    %v907 = vpack.c.bf16 %v902, %v899
    %v908 = vlaneseq
    %v909 = vshrl.u32 %v908, 7
    %v910 = vsub.s32 0, %v909
    %v911 = vrot.slane %v823, %v910
    %912 = vmatprep.subr.bf16.mxu0 0
    %913 = vmatpush1.bf16.msra.mxu0 %v905
    %914 = vmatprep.subr.bf16.mxu0 0
    %915 = vmatpush1.bf16.msra.mxu0 %v906
    %916 = vmatprep.subr.bf16.mxu0 0
    %917 = vmatpush1.bf16.msra.mxu0 %v907
    %918 = vmatprep.subr.bf16.mxu0 0
    %919 = vmatpush1.bf16.msra.mxu0 0
    %920 = vmatprep.subr.bf16.mxu0 0
    %921 = vmatpush1.bf16.msra.mxu0 0
    %922 = vmatprep.subr.bf16.mxu0 0
    %923 = vmatpush1.bf16.msra.mxu0 0
    %924 = vmatprep.subr.bf16.mxu0 0
    %925 = vmatpush1.bf16.msra.mxu0 0
    %926 = vmatprep.subr.bf16.mxu0 0
    %927 = vmatpush1.bf16.msra.mxu0 0
    %928 = vmatprep.subr.bf16.mxu0 0
    %929 = vmatpush1.bf16.msra.mxu0 0
    %930 = vmatprep.subr.bf16.mxu0 0
    %931 = vmatpush1.bf16.msra.mxu0 0
    %932 = vmatprep.subr.bf16.mxu0 0
    %933 = vmatpush1.bf16.msra.mxu0 0
    %934 = vmatprep.subr.bf16.mxu0 0
    %935 = vmatpush1.bf16.msra.mxu0 0
    %936 = vmatprep.subr.bf16.mxu0 0
    %937 = vmatpush1.bf16.msra.mxu0 0
    %938 = vmatprep.subr.bf16.mxu0 0
    %939 = vmatpush1.bf16.msra.mxu0 0
    %940 = vmatprep.subr.bf16.mxu0 0
    %941 = vmatpush1.bf16.msra.mxu0 0
    %942 = vmatprep.subr.bf16.mxu0 0
    %943 = vmatpush1.bf16.msra.mxu0 0
    %944 = vmatprep.mubr.bf16.mxu0 0
    %945 = vmatmul.mubr.bf16.gmra.mrb[0].mxu0 %v382
    %v946 = vpop.f32.mrb[0].mxu0
    %v947 = vadd.f32 %v911, %v946
    %v948 = vpop.f32.mrb[0].mxu0
    %v949 = vpop.f32.mrb[0].mxu0
    %v950 = vadd.f32 %v911, %v949
    %v951 = vpop.f32.mrb[0].mxu0
    %952 = vmatprep.mubr.bf16.mxu0 0
    %953 = vmatmul.mubr.bf16.gmra.mrb[0].mxu0 %v385
    %v954 = vpop.f32.mrb[0].mxu0
    %v955 = vadd.f32 %v911, %v954
    %v956 = vpop.f32.mrb[0].mxu0
    %v957 = vpop.f32.mrb[0].mxu0
    %v958 = vadd.f32 %v911, %v957
    %v959 = vpop.f32.mrb[0].mxu0
    %960 = vmatprep.mubr.bf16.mxu0 0
    %961 = vmatmul.mubr.bf16.gmra.mrb[0].mxu0 %v388
    %v962 = vpop.f32.mrb[0].mxu0
    %v963 = vadd.f32 %v911, %v962
    %v964 = vpop.f32.mrb[0].mxu0
    %v965 = vpop.f32.mrb[0].mxu0
    %v966 = vadd.f32 %v911, %v965
    %v967 = vpop.f32.mrb[0].mxu0
    %968 = vdwg.mxu0
    %vm969 = vcmp.ge.f32.partialorder %v947, 0.0
    %vm970 = vcmp.ge.f32.partialorder %v950, 0.0
    %vm971 = vcmp.ge.f32.partialorder %v955, 0.0
    %vm972 = vcmp.ge.f32.partialorder %v958, 0.0
    %vm973 = vcmp.ge.f32.partialorder %v963, 0.0
    %vm974 = vcmp.ge.f32.partialorder %v966, 0.0
    %v975 = vmul.f32 %v947, 0.2
    %v976 = vmul.f32 %v950, 0.2
    %v977 = vmul.f32 %v955, 0.2
    %v978 = vmul.f32 %v958, 0.2
    %v979 = vmul.f32 %v963, 0.2
    %v980 = vmul.f32 %v966, 0.2
    %v981 = vsel %vm969, %v947, %v975
    %v982 = vsel %vm970, %v950, %v976
    %v983 = vsel %vm971, %v955, %v977
    %v984 = vsel %vm972, %v958, %v978
    %v985 = vsel %vm973, %v963, %v979
    %v986 = vsel %vm974, %v966, %v980
    %v987 = vadd.f32 %v813, %v981
    %v988 = vadd.f32 %v814, %v982
    %v989 = vadd.f32 %v815, %v983
    %v990 = vadd.f32 %v816, %v984
    %v991 = vadd.f32 %v817, %v985
    %v992 = vadd.f32 %v818, %v986
    %v993 = vsel %vm291, %v987, 0.0
    %994 = vadd.xlane.f32.xlu0 %v993
    %v995 = vpop.xlane.xlu0 %994
    %v996 = vsel %vm291, %v988, 0.0
    %997 = vadd.xlane.f32.xlu0 %v996
    %v998 = vpop.xlane.xlu0 %997
    %v999 = vsel %vm291, %v989, 0.0
    %1000 = vadd.xlane.f32.xlu0 %v999
    %v1001 = vpop.xlane.xlu0 %1000
    %v1002 = vsel %vm291, %v990, 0.0
    %1003 = vadd.xlane.f32.xlu0 %v1002
    %v1004 = vpop.xlane.xlu0 %1003
    %v1005 = vsel %vm291, %v991, 0.0
    %1006 = vadd.xlane.f32.xlu0 %v1005
    %v1007 = vpop.xlane.xlu0 %1006
    %v1008 = vsel %vm291, %v992, 0.0
    %1009 = vadd.xlane.f32.xlu0 %v1008
    %v1010 = vpop.xlane.xlu0 %1009
    %v1011 = vld [vmem:[%s4 + $0x10] sm:$0xff]
    %v1012 = vld [vmem:[%s4 + $0x18] sm:$0xff]
    %v1013 = vld [vmem:[%s4 + $0x20] sm:$0xff]
    %v1014 = vld [vmem:[%s4 + $0x28] sm:$0xff]
    %v1015 = vld [vmem:[%s4 + $0x30] sm:$0xff]
    %v1016 = vld [vmem:[%s4 + $0x38] sm:$0xff]
    %v1017 = vld [vmem:[%s4 + $0x48] sm:$0x3]
    %v1018 = vmul.f32 %v995, %v1011
    %v1019 = vmul.f32 %v998, %v1012
    %v1020 = vmul.f32 %v1001, %v1013
    %v1021 = vmul.f32 %v1004, %v1014
    %v1022 = vmul.f32 %v1007, %v1015
    %v1023 = vmul.f32 %v1010, %v1016
    %v1024 = vld [vmem:[%s4 + $0x40] sm:$0x1]
    %v1025 = vlaneseq
    %v1026 = vshrl.u32 %v1025, 7
    %v1027 = vsub.s32 0, %v1026
    %v1028 = vrot.slane %v1024, %v1027
    %v1030 = vsel %vm380, %v1017, 0
    %1032 = vmatprep.subr.mxu0 0.0
    %1033 = vmatpush1.msra.mxu0 %v1018
    %1034 = vmatprep.subr.mxu0 0.0
    %1035 = vmatpush1.msra.mxu0 %v1019
    %1036 = vmatprep.subr.mxu0 0.0
    %1037 = vmatpush1.msra.mxu0 %v1020
    %1038 = vmatprep.subr.mxu0 0.0
    %1039 = vmatpush1.msra.mxu0 %v1021
    %1040 = vmatprep.subr.mxu0 0.0
    %1041 = vmatpush1.msra.mxu0 %v1022
    %1042 = vmatprep.subr.mxu0 0.0
    %1043 = vmatpush1.msra.mxu0 %v1023
    %1044 = vmatprep.subr.mxu0 0.0
    %1045 = vmatpush1.msra.mxu0 0.0
    %1046 = vmatprep.subr.mxu0 0.0
    %1047 = vmatpush1.msra.mxu0 0.0
    %1048 = vmatprep.subr.mxu0 0.0
    %1049 = vmatpush1.msra.mxu0 0.0
    %1050 = vmatprep.subr.mxu0 0.0
    %1051 = vmatpush1.msra.mxu0 0.0
    %1052 = vmatprep.subr.mxu0 0.0
    %1053 = vmatpush1.msra.mxu0 0.0
    %1054 = vmatprep.subr.mxu0 0.0
    %1055 = vmatpush1.msra.mxu0 0.0
    %1056 = vmatprep.subr.mxu0 0.0
    %1057 = vmatpush1.msra.mxu0 0.0
    %1058 = vmatprep.subr.mxu0 0.0
    %1059 = vmatpush1.msra.mxu0 0.0
    %1060 = vmatprep.subr.mxu0 0.0
    %1061 = vmatpush1.msra.mxu0 0.0
    %1062 = vmatprep.subr.mxu0 0.0
    %1063 = vmatpush1.msra.mxu0 0.0
    %1064 = vmatprep.subr.mxu0 0.0
    %1065 = vmatpush1.msra.mxu0 0.0
    %1066 = vmatprep.subr.mxu0 0.0
    %1067 = vmatpush1.msra.mxu0 0.0
    %1068 = vmatprep.subr.mxu0 0.0
    %1069 = vmatpush1.msra.mxu0 0.0
    %1070 = vmatprep.subr.mxu0 0.0
    %1071 = vmatpush1.msra.mxu0 0.0
    %1072 = vmatprep.subr.mxu0 0.0
    %1073 = vmatpush1.msra.mxu0 0.0
    %1074 = vmatprep.subr.mxu0 0.0
    %1075 = vmatpush1.msra.mxu0 0.0
    %1076 = vmatprep.subr.mxu0 0.0
    %1077 = vmatpush1.msra.mxu0 0.0
    %1078 = vmatprep.subr.mxu0 0.0
    %1079 = vmatpush1.msra.mxu0 0.0
    %1080 = vmatprep.subr.mxu0 0.0
    %1081 = vmatpush1.msra.mxu0 0.0
    %1082 = vmatprep.subr.mxu0 0.0
    %1083 = vmatpush1.msra.mxu0 0.0
    %1084 = vmatprep.subr.mxu0 0.0
    %1085 = vmatpush1.msra.mxu0 0.0
    %1086 = vmatprep.subr.mxu0 0.0
    %1087 = vmatpush1.msra.mxu0 0.0
    %1088 = vmatprep.subr.mxu0 0.0
    %1089 = vmatpush1.msra.mxu0 0.0
    %1090 = vmatprep.subr.mxu0 0.0
    %1091 = vmatpush1.msra.mxu0 0.0
    %1092 = vmatprep.subr.mxu0 0.0
    %1093 = vmatpush1.msra.mxu0 0.0
    %1094 = vmatprep.subr.mxu0 0.0
    %1095 = vmatpush1.msra.mxu0 0.0
    %1096 = vmatprep.mubr.f32.mxu0 0.0
    %1097 = vmatmul.mubr.f32.gmra.mrb[0].mxu0 %v1030
    %v1098 = vpop.f32.mrb[0].mxu0
    %v1099 = vadd.f32 %v1028, %v1098
    %v1100 = vpop.f32.mrb[0].mxu0
    %1101 = vdwg.mxu0
    %v1102 = vmul.f32 %v1099, 1.442695
    %v1103 = vpow.pop %v1102
    %vm1104 = vcmask 50176
    %v1105 = vsel %vm1104, %v1103, 0.0
    %1106 = vadd.xlane.f32.xlu0 %v1105
    %v1107 = vpop.xlane.xlu0 %1106
    %v1108 = vadd.f32 %v1107, 1.0
    %v1109 = vrcp.pop %v1108
    %v1110 = vmul.f32 %v1103, %v1109
    %v1111 = vld [vmem:[%s2] sm:$0x3]
    %v1112 = vld [vmem:[%s4 + $0x50] sm:$0x1f]
    %v1113 = vld [vmem:[%s4 + $0x58] sm:$0x1]
    %v1114 = vlaneseq
    %v1115 = vshrl.u32 %v1114, 7
    %v1116 = vsub.s32 0, %v1115
    %v1117 = vrot.slane %v1113, %v1116
    %vm1118 = vcmask 39936
    %v1120 = vsel %vm1118, %v1111, 0
    %vm1122 = vcmask 1044480
    %v1124 = vsel %vm1122, %v1112, 0
    %1126 = vmatprep.subr.mxu0 0.0
    %1127 = vmatpush1.msra.mxu0 %v1124
    %1128 = vmatprep.subr.mxu0 0.0
    %1129 = vmatpush1.msra.mxu0 0.0
    %1130 = vmatprep.subr.mxu0 0.0
    %1131 = vmatpush1.msra.mxu0 0.0
    %1132 = vmatprep.subr.mxu0 0.0
    %1133 = vmatpush1.msra.mxu0 0.0
    %1134 = vmatprep.subr.mxu0 0.0
    %1135 = vmatpush1.msra.mxu0 0.0
    %1136 = vmatprep.subr.mxu0 0.0
    %1137 = vmatpush1.msra.mxu0 0.0
    %1138 = vmatprep.subr.mxu0 0.0
    %1139 = vmatpush1.msra.mxu0 0.0
    %1140 = vmatprep.subr.mxu0 0.0
    %1141 = vmatpush1.msra.mxu0 0.0
    %1142 = vmatprep.subr.mxu0 0.0
    %1143 = vmatpush1.msra.mxu0 0.0
    %1144 = vmatprep.subr.mxu0 0.0
    %1145 = vmatpush1.msra.mxu0 0.0
    %1146 = vmatprep.subr.mxu0 0.0
    %1147 = vmatpush1.msra.mxu0 0.0
    %1148 = vmatprep.subr.mxu0 0.0
    %1149 = vmatpush1.msra.mxu0 0.0
    %1150 = vmatprep.subr.mxu0 0.0
    %1151 = vmatpush1.msra.mxu0 0.0
    %1152 = vmatprep.subr.mxu0 0.0
    %1153 = vmatpush1.msra.mxu0 0.0
    %1154 = vmatprep.subr.mxu0 0.0
    %1155 = vmatpush1.msra.mxu0 0.0
    %1156 = vmatprep.subr.mxu0 0.0
    %1157 = vmatpush1.msra.mxu0 0.0
    %1158 = vmatprep.subr.mxu0 0.0
    %1159 = vmatpush1.msra.mxu0 0.0
    %1160 = vmatprep.subr.mxu0 0.0
    %1161 = vmatpush1.msra.mxu0 0.0
    %1162 = vmatprep.subr.mxu0 0.0
    %1163 = vmatpush1.msra.mxu0 0.0
    %1164 = vmatprep.subr.mxu0 0.0
    %1165 = vmatpush1.msra.mxu0 0.0
    %1166 = vmatprep.subr.mxu0 0.0
    %1167 = vmatpush1.msra.mxu0 0.0
    %1168 = vmatprep.subr.mxu0 0.0
    %1169 = vmatpush1.msra.mxu0 0.0
    %1170 = vmatprep.subr.mxu0 0.0
    %1171 = vmatpush1.msra.mxu0 0.0
    %1172 = vmatprep.subr.mxu0 0.0
    %1173 = vmatpush1.msra.mxu0 0.0
    %1174 = vmatprep.subr.mxu0 0.0
    %1175 = vmatpush1.msra.mxu0 0.0
    %1176 = vmatprep.subr.mxu0 0.0
    %1177 = vmatpush1.msra.mxu0 0.0
    %1178 = vmatprep.subr.mxu0 0.0
    %1179 = vmatpush1.msra.mxu0 0.0
    %1180 = vmatprep.subr.mxu0 0.0
    %1181 = vmatpush1.msra.mxu0 0.0
    %1182 = vmatprep.subr.mxu0 0.0
    %1183 = vmatpush1.msra.mxu0 0.0
    %1184 = vmatprep.subr.mxu0 0.0
    %1185 = vmatpush1.msra.mxu0 0.0
    %1186 = vmatprep.subr.mxu0 0.0
    %1187 = vmatpush1.msra.mxu0 0.0
    %1188 = vmatprep.subr.mxu0 0.0
    %1189 = vmatpush1.msra.mxu0 0.0
    %1190 = vmatprep.mubr.f32.mxu0 0.0
    %1191 = vmatmul.mubr.f32.gmra.mrb[0].mxu0 %v1120
    %v1192 = vpop.f32.mrb[0].mxu0
    %v1193 = vadd.f32 %v1117, %v1192
    %v1194 = vpop.f32.mrb[0].mxu0
    %1195 = vdwg.mxu0
    %vm1196 = vcmp.ge.f32.partialorder %v1193, 0.0
    %v1197 = vmul.f32 %v1193, 0.2
    %v1198 = vsel %vm1196, %v1193, %v1197
    %v1199 = vld [vmem:[%s4 + $0x60] sm:$0xff]
    %v1200 = vld [vmem:[%s4 + $0x68] sm:$0xff]
    %v1201 = vld [vmem:[%s4 + $0x70] sm:$0xff]
    %v1202 = vld [vmem:[%s4 + $0x78] sm:$0xff]
    %v1203 = vld [vmem:[%s4 + $0x80] sm:$0x1]
    %v1204 = vlaneseq
    %v1205 = vshrl.u32 %v1204, 7
    %v1206 = vsub.s32 0, %v1205
    %v1207 = vrot.slane %v1203, %v1206
    %v1209 = vsel %vm291, %v1198, 0
    %1211 = vmatprep.subr.mxu0 0.0
    %1212 = vmatpush1.msra.mxu0 %v1199
    %1213 = vmatprep.subr.mxu0 0.0
    %1214 = vmatpush1.msra.mxu0 %v1200
    %1215 = vmatprep.subr.mxu0 0.0
    %1216 = vmatpush1.msra.mxu0 %v1201
    %1217 = vmatprep.subr.mxu0 0.0
    %1218 = vmatpush1.msra.mxu0 %v1202
    %1219 = vmatprep.subr.mxu0 0.0
    %1220 = vmatpush1.msra.mxu0 0.0
    %1221 = vmatprep.subr.mxu0 0.0
    %1222 = vmatpush1.msra.mxu0 0.0
    %1223 = vmatprep.subr.mxu0 0.0
    %1224 = vmatpush1.msra.mxu0 0.0
    %1225 = vmatprep.subr.mxu0 0.0
    %1226 = vmatpush1.msra.mxu0 0.0
    %1227 = vmatprep.subr.mxu0 0.0
    %1228 = vmatpush1.msra.mxu0 0.0
    %1229 = vmatprep.subr.mxu0 0.0
    %1230 = vmatpush1.msra.mxu0 0.0
    %1231 = vmatprep.subr.mxu0 0.0
    %1232 = vmatpush1.msra.mxu0 0.0
    %1233 = vmatprep.subr.mxu0 0.0
    %1234 = vmatpush1.msra.mxu0 0.0
    %1235 = vmatprep.subr.mxu0 0.0
    %1236 = vmatpush1.msra.mxu0 0.0
    %1237 = vmatprep.subr.mxu0 0.0
    %1238 = vmatpush1.msra.mxu0 0.0
    %1239 = vmatprep.subr.mxu0 0.0
    %1240 = vmatpush1.msra.mxu0 0.0
    %1241 = vmatprep.subr.mxu0 0.0
    %1242 = vmatpush1.msra.mxu0 0.0
    %1243 = vmatprep.subr.mxu0 0.0
    %1244 = vmatpush1.msra.mxu0 0.0
    %1245 = vmatprep.subr.mxu0 0.0
    %1246 = vmatpush1.msra.mxu0 0.0
    %1247 = vmatprep.subr.mxu0 0.0
    %1248 = vmatpush1.msra.mxu0 0.0
    %1249 = vmatprep.subr.mxu0 0.0
    %1250 = vmatpush1.msra.mxu0 0.0
    %1251 = vmatprep.subr.mxu0 0.0
    %1252 = vmatpush1.msra.mxu0 0.0
    %1253 = vmatprep.subr.mxu0 0.0
    %1254 = vmatpush1.msra.mxu0 0.0
    %1255 = vmatprep.subr.mxu0 0.0
    %1256 = vmatpush1.msra.mxu0 0.0
    %1257 = vmatprep.subr.mxu0 0.0
    %1258 = vmatpush1.msra.mxu0 0.0
    %1259 = vmatprep.subr.mxu0 0.0
    %1260 = vmatpush1.msra.mxu0 0.0
    %1261 = vmatprep.subr.mxu0 0.0
    %1262 = vmatpush1.msra.mxu0 0.0
    %1263 = vmatprep.subr.mxu0 0.0
    %1264 = vmatpush1.msra.mxu0 0.0
    %1265 = vmatprep.subr.mxu0 0.0
    %1266 = vmatpush1.msra.mxu0 0.0
    %1267 = vmatprep.subr.mxu0 0.0
    %1268 = vmatpush1.msra.mxu0 0.0
    %1269 = vmatprep.subr.mxu0 0.0
    %1270 = vmatpush1.msra.mxu0 0.0
    %1271 = vmatprep.subr.mxu0 0.0
    %1272 = vmatpush1.msra.mxu0 0.0
    %1273 = vmatprep.subr.mxu0 0.0
    %1274 = vmatpush1.msra.mxu0 0.0
    %1275 = vmatprep.mubr.f32.mxu0 0.0
    %1276 = vmatmul.mubr.f32.gmra.mrb[0].mxu0 %v1209
    %v1277 = vpop.f32.mrb[0].mxu0
    %v1278 = vadd.f32 %v1207, %v1277
    %v1279 = vpop.f32.mrb[0].mxu0
    %1280 = vdwg.mxu0
    %v1281 = vmul.f32 %v1278, 1.442695
    %v1282 = vpow.pop %v1281
    %v1283 = vmul.f32 %v1110, %v1282
    %1284 = vst.msk [vmem:[#allocation2] sm:$0x3] %vm1104, %v1283
    // Predicated region
    $region26: #{schetnet_forward.1} parent=1 // pred_check
      _
    $region27: #{schetnet_forward.1} parent=1 // pred_check_branch
      %1286 = sbr.rel (0) target = $region29
    $region28: #{schetnet_forward.1} parent=1 // pred_region
      %s1288 = ssub.s32 32, 32
      %1289 = vsyncadd [#allocation3], %s1288
      %s1291 = sshll.u32 [#allocation2], 4
      %s1292 = int_to_ptr.vmem [resolvable:$true] %s1291
      %1294 = dma.vmem_to_hbm [thread:$0]  %s1292, 32, %s6, [#allocation3]
    $region29: #{schetnet_forward.1} parent=1 // pred_fallthru
      _
    // Predicated region
    $region30: #{schetnet_forward.1} parent=1 // pred_check
      _
    $region31: #{schetnet_forward.1} parent=1 // pred_check_branch
      %1296 = sbr.rel (0) target = $region33
    $region32: #{schetnet_forward.1} parent=1 // pred_region
      %1297 = dma.done [#allocation3], 32
    $region33: #{schetnet_forward.1} parent=1 // pred_fallthru
      _
    %1298 = vsyncpa [#allocation3], 1

</llo_original>
